<compile_context>
chip_gen: v5e
topology: v5e:2x2
jax: 0.10.0
libtpu: 0.0.40
codegen_flags: <defaults>
</compile_context>

<pallas_src>
import jax
import jax.numpy as jnp
from jax.experimental import pallas as pl
from jax.experimental.pallas import tpu as pltpu

D_MODEL = 32
NHEAD = 4
HEAD_DIM = D_MODEL // NHEAD
DFF = 256            # dim_feedforward (module default; lane-dense multiple of 128)
EPS = 1e-5           # nn.LayerNorm default eps
NEG_INF = -1e30      # masked-score fill (exp underflows to exactly 0)


# ---------------------------------------------------------------------------
# In-kernel helpers (traced Python, flat (rows, D) activations)
# ---------------------------------------------------------------------------
def _attn(x_q, kv16, seg, bias, w_ref, b_ref):
    """Multi-head attention with all heads batched along the lane axis.

    x_q : (R, D)  f32        query rows (a row block of the residual stream)
    kv16: (Nk, D) bf16       key/value source rows
    seg : (NHEAD*Nk, D) f32  block-diagonal head structure: seg[r, d] = 1 iff
                             r // Nk == d // HEAD_DIM, else 0
    bias: (R, NHEAD*Nk) f32  additive same-batch mask (0 / -1e30), head-tiled
    w_ref: (4, D, D) bf16    [wq*scale, wk, wv, wo]
    b_ref: (4, D)    f32     [bq*scale, bk, bv, bo]
    """
    xq16 = x_q.astype(jnp.bfloat16)
    q = jnp.dot(xq16, w_ref[0], preferred_element_type=jnp.float32) + b_ref[0:1, :]
    k = jnp.dot(kv16, w_ref[1], preferred_element_type=jnp.float32) + b_ref[1:2, :]
    v = jnp.dot(kv16, w_ref[2], preferred_element_type=jnp.float32) + b_ref[2:3, :]

    # Replicate K/V NHEAD times along sublanes and zero cross-head blocks:
    # row r of k_bd/v_bd is key row (r % Nk) restricted to head (r // Nk).
    k_bd = (jnp.concatenate([k] * NHEAD, axis=0) * seg).astype(jnp.bfloat16)
    v_bd = (jnp.concatenate([v] * NHEAD, axis=0) * seg).astype(jnp.bfloat16)

    # One QK^T for all heads (contract the feature axis of both operands).
    s = jax.lax.dot_general(q.astype(jnp.bfloat16), k_bd,
                            (((1,), (1,)), ((), ())),
                            preferred_element_type=jnp.float32) + bias   # (R, NHEAD*Nk)

    # A row-global max is constant within every head segment, so subtracting
    # it leaves each head's softmax unchanged while keeping exp() stable.
    m = jnp.max(s, axis=-1, keepdims=True)
    p = jnp.exp(s - m)                       # masked entries underflow to exactly 0
    p16 = p.astype(jnp.bfloat16)

    pv = jnp.dot(p16, v_bd, preferred_element_type=jnp.float32)            # (R, D)
    denom = jnp.dot(p16, seg.astype(jnp.bfloat16),
                    preferred_element_type=jnp.float32)                    # (R, D)
    # normalize AFTER the P@V matmul; +1e-30 guards a future fully-masked row
    attn = pv * pl.reciprocal(denom + 1e-30, approx=True)
    return jnp.dot(attn.astype(jnp.bfloat16), w_ref[3],
                   preferred_element_type=jnp.float32) + b_ref[3:4, :]


def _add_layernorm(x, y, g, b):
    """LayerNorm(x + y) over features (biased variance, like PyTorch), in f32."""
    z = x + y
    mean = jnp.mean(z, axis=-1, keepdims=True)
    var = jnp.mean((z - mean) ** 2, axis=-1, keepdims=True)
    return (z - mean) * jax.lax.rsqrt(var + EPS) * g + b


# ---------------------------------------------------------------------------
# The fused decoder-layer kernel (everything stays in VMEM)
# ---------------------------------------------------------------------------
def _decoder_layer_kernel(x_ref, xf_ref, mq_ref, mp_ref,
                          bias_s_ref, bias_q_ref, bias_p_ref,
                          seg_s_ref, seg_q_ref, seg_p_ref,
                          sa_w_ref, sa_b_ref,
                          aq_w_ref, aq_b_ref,
                          ap_w_ref, ap_b_ref,
                          ln_g_ref, ln_b_ref,
                          w1_ref, b1_ref, w2_ref, b2_ref,
                          o_ref):
    x = x_ref[...].astype(jnp.float32)              # (R, D) query-row block
    xf16 = xf_ref[...].astype(jnp.bfloat16)         # (Nq, D) full tgt (self-attn K/V)
    mq16 = mq_ref[...].astype(jnp.bfloat16)         # (Nkq, D)
    mp16 = mp_ref[...].astype(jnp.bfloat16)         # (Nkp, D)

    # self-attention + add & norm1   (dropout1 = identity in eval mode)
    t2 = _attn(x, xf16, seg_s_ref[...], bias_s_ref[...], sa_w_ref, sa_b_ref)
    x = _add_layernorm(x, t2, ln_g_ref[0:1, :], ln_b_ref[0:1, :])

    # cross-attention over memory_q + add & norm2
    t2 = _attn(x, mq16, seg_q_ref[...], bias_q_ref[...], aq_w_ref, aq_b_ref)
    x = _add_layernorm(x, t2, ln_g_ref[1:2, :], ln_b_ref[1:2, :])

    # cross-attention over memory_p + add & norm3
    t2 = _attn(x, mp16, seg_p_ref[...], bias_p_ref[...], ap_w_ref, ap_b_ref)
    x = _add_layernorm(x, t2, ln_g_ref[2:3, :], ln_b_ref[2:3, :])

    # feed-forward (relu) + add & norm4   (dropout / dropout4 = identity)
    h = jnp.maximum(
        jnp.dot(x.astype(jnp.bfloat16), w1_ref[...],
                preferred_element_type=jnp.float32) + b1_ref[...], 0.0)
    t2 = jnp.dot(h.astype(jnp.bfloat16), w2_ref[...],
                 preferred_element_type=jnp.float32) + b2_ref[...]
    x = _add_layernorm(x, t2, ln_g_ref[3:4, :], ln_b_ref[3:4, :])

    o_ref[...] = x.astype(o_ref.dtype)


# ---------------------------------------------------------------------------
# One-time parameter preparation (no per-call weight math in the wrapper)
# ---------------------------------------------------------------------------
def prepare_params(params):
    scale = 1.0 / (HEAD_DIM ** 0.5)

    def prep_attn(p):
        w = jnp.stack([p["wq"] * scale, p["wk"], p["wv"], p["wo"]],
                      axis=0).astype(jnp.bfloat16)                 # (4, D, D)
        b = jnp.concatenate([p["bq"] * scale, p["bk"], p["bv"], p["bo"]],
                            axis=0).astype(jnp.float32)            # (4, D)
        return w, b

    saw, sab = prep_attn(params["self_attn"])
    aqw, aqb = prep_attn(params["attn_q"])
    apw, apb = prep_attn(params["attn_p"])
    ln_g = jnp.concatenate([params[f"norm{i}"]["g"] for i in (1, 2, 3, 4)], axis=0)
    ln_b = jnp.concatenate([params[f"norm{i}"]["b"] for i in (1, 2, 3, 4)], axis=0)
    return dict(
        saw=saw, sab=sab, aqw=aqw, aqb=aqb, apw=apw, apb=apb,
        ln_g=ln_g, ln_b=ln_b,
        w1=params["ffn"]["w1"].astype(jnp.bfloat16), b1=params["ffn"]["b1"],
        w2=params["ffn"]["w2"].astype(jnp.bfloat16), b2=params["ffn"]["b2"],
    )


# ---------------------------------------------------------------------------
# Wrapper: seq-first (T, B, D) API like PyTorch (batch_first=False)
# ---------------------------------------------------------------------------
def _full_spec(shape):
    zeros = (0,) * len(shape)
    return pl.BlockSpec(shape, lambda i: zeros)


def _row_spec(rb, ncols):
    return pl.BlockSpec((rb, ncols), lambda i: (i, 0))


def decoder_layer_forward(tgt, memory_q, memory_p, prep):
    T, B, D = tgt.shape
    sq = memory_q.shape[0]
    sp = memory_p.shape[0]
    nq, nkq, nkp = T * B, sq * B, sp * B

    x = tgt.reshape(nq, D)              # free contiguous reshapes, no transpose
    mq = memory_q.reshape(nkq, D)
    mp = memory_p.reshape(nkp, D)

    # --- shape-only constants (folded at compile time under jit) -----------
    def same_batch_bias(n_rows, nk):
        # column r of the head-stacked score slab refers to key row (r % nk),
        # whose batch index is (r % nk) % B == r % B since B divides nk.
        qi = jax.lax.broadcasted_iota(jnp.int32, (n_rows, NHEAD * nk), 0)
        kj = jax.lax.broadcasted_iota(jnp.int32, (n_rows, NHEAD * nk), 1)
        return jnp.where((qi % B) == (kj % B), 0.0, NEG_INF).astype(jnp.float32)

    def head_seg(nk):
        r = jax.lax.broadcasted_iota(jnp.int32, (NHEAD * nk, D), 0)
        c = jax.lax.broadcasted_iota(jnp.int32, (NHEAD * nk, D), 1)
        return ((r // nk) == (c // HEAD_DIM)).astype(jnp.float32)

    bias_s, bias_q, bias_p = (same_batch_bias(nq, nq),
                              same_batch_bias(nq, nkq),
                              same_batch_bias(nq, nkp))
    seg_s, seg_q, seg_p = head_seg(nq), head_seg(nkq), head_seg(nkp)

    # --- query-row grid (parallel axis -> both v7x TensorCores) ------------
    rb = nq if nq <= 256 else 256
    assert nq % rb == 0, "query rows must tile evenly into the row grid"
    grid = (nq // rb,)

    out = pl.pallas_call(
        _decoder_layer_kernel,
        out_shape=jax.ShapeDtypeStruct((nq, D), tgt.dtype),
        grid=grid,
        in_specs=[
            _row_spec(rb, D),                # x (query-row block)
            _full_spec((nq, D)),             # full tgt (self-attn K/V source)
            _full_spec((nkq, D)),            # memory_q
            _full_spec((nkp, D)),            # memory_p
            _row_spec(rb, NHEAD * nq),       # additive bias: self
            _row_spec(rb, NHEAD * nkq),      # additive bias: memory_q
            _row_spec(rb, NHEAD * nkp),      # additive bias: memory_p
            _full_spec((NHEAD * nq, D)),     # head-structure: self
            _full_spec((NHEAD * nkq, D)),    # head-structure: memory_q
            _full_spec((NHEAD * nkp, D)),    # head-structure: memory_p
            _full_spec((4, D, D)), _full_spec((4, D)),   # self-attn W, b
            _full_spec((4, D, D)), _full_spec((4, D)),   # attn_q   W, b
            _full_spec((4, D, D)), _full_spec((4, D)),   # attn_p   W, b
            _full_spec((4, D)), _full_spec((4, D)),      # LayerNorm g, b
            _full_spec((D, DFF)), _full_spec((1, DFF)),  # FFN w1, b1
            _full_spec((DFF, D)), _full_spec((1, D)),    # FFN w2, b2
        ],
        out_specs=_row_spec(rb, D),
        compiler_params=pltpu.CompilerParams(
            dimension_semantics=("parallel",),
            vmem_limit_bytes=32 * 1024 * 1024,
        ),
    )(
        x, x, mq, mp,
        bias_s, bias_q, bias_p,
        seg_s, seg_q, seg_p,
        prep["saw"], prep["sab"],
        prep["aqw"], prep["aqb"],
        prep["apw"], prep["apb"],
        prep["ln_g"], prep["ln_b"],
        prep["w1"], prep["b1"], prep["w2"], prep["b2"],
    )
    return out.reshape(T, B, D)


# ---------------------------------------------------------------------------
# Pure-JAX f32 reference (same math, no Pallas) for the correctness check
# ---------------------------------------------------------------------------
def _ref_mha(xq, xkv, p):
    q = xq @ p["wq"] + p["bq"]
    k = xkv @ p["wk"] + p["bk"]
    v = xkv @ p["wv"] + p["bv"]
    T, B, D = q.shape
    S = k.shape[0]
    qh = q.reshape(T, B, NHEAD, HEAD_DIM)
    kh = k.reshape(S, B, NHEAD, HEAD_DIM)
    vh = v.reshape(S, B, NHEAD, HEAD_DIM)
    s = jnp.einsum("tbhd,sbhd->bhts", qh, kh) / (HEAD_DIM ** 0.5)
    a = jax.nn.softmax(s, axis=-1)
    o = jnp.einsum("bhts,sbhd->tbhd", a, vh).reshape(T, B, D)
    return o @ p["wo"] + p["bo"]


def _ref_ln(z, g, b):
    mean = jnp.mean(z, axis=-1, keepdims=True)
    var = jnp.mean((z - mean) ** 2, axis=-1, keepdims=True)
    return (z - mean) * jax.lax.rsqrt(var + EPS) * g + b


def decoder_layer_ref(tgt, memory_q, memory_p, params):
    x = tgt
    x = _ref_ln(x + _ref_mha(x, x, params["self_attn"]),
                params["norm1"]["g"], params["norm1"]["b"])
    x = _ref_ln(x + _ref_mha(x, memory_q, params["attn_q"]),
                params["norm2"]["g"], params["norm2"]["b"])
    x = _ref_ln(x + _ref_mha(x, memory_p, params["attn_p"]),
                params["norm3"]["g"], params["norm3"]["b"])
    h = jnp.maximum(x @ params["ffn"]["w1"] + params["ffn"]["b1"], 0.0)
    x = _ref_ln(x + (h @ params["ffn"]["w2"] + params["ffn"]["b2"]),
                params["norm4"]["g"], params["norm4"]["b"])
    return x


# ---------------------------------------------------------------------------
# Deterministic parameter initialization (shapes from the module __init__)
# ---------------------------------------------------------------------------
def init_params(key):
    def mat(k, shape, scale=0.05):
        return jax.random.normal(k, shape, jnp.float32) * scale

    def mha_params(k):
        kk = jax.random.split(k, 8)
        return dict(
            wq=mat(kk[0], (D_MODEL, D_MODEL)), wk=mat(kk[1], (D_MODEL, D_MODEL)),
            wv=mat(kk[2], (D_MODEL, D_MODEL)), wo=mat(kk[3], (D_MODEL, D_MODEL)),
            bq=mat(kk[4], (1, D_MODEL)), bk=mat(kk[5], (1, D_MODEL)),
            bv=mat(kk[6], (1, D_MODEL)), bo=mat(kk[7], (1, D_MODEL)),
        )

    def ln_params(k):
        kk = jax.random.split(k, 2)
        return dict(g=1.0 + mat(kk[0], (1, D_MODEL), 0.1),
                    b=mat(kk[1], (1, D_MODEL), 0.1))

    ks = jax.random.split(key, 9)
    return dict(
        self_attn=mha_params(ks[0]),
        attn_q=mha_params(ks[1]),
        attn_p=mha_params(ks[2]),
        ffn=dict(w1=mat(ks[3], (D_MODEL, DFF)), b1=mat(ks[4], (1, DFF)),
                 w2=mat(ks[5], (DFF, D_MODEL)), b2=mat(ks[6], (1, D_MODEL))),
        norm1=ln_params(jax.random.fold_in(ks[7], 1)),
        norm2=ln_params(jax.random.fold_in(ks[7], 2)),
        norm3=ln_params(jax.random.fold_in(ks[7], 3)),
        norm4=ln_params(jax.random.fold_in(ks[8], 4)),
    )


if __name__ == "__main__":
    key = jax.random.PRNGKey(0)
    k_p, k_t, k_q, k_m = jax.random.split(key, 4)

    T, S_Q, S_P, B = 8, 8, 8, 2        # seq-first shapes: (seq, batch, d_model)
    params = init_params(k_p)
    prep = prepare_params(params)       # one-time: stack / bf16-cast / fold scale
    tgt = jax.random.normal(k_t, (T, B, D_MODEL), jnp.float32)
    memory_q = jax.random.normal(k_q, (S_Q, B, D_MODEL), jnp.float32)
    memory_p = jax.random.normal(k_m, (S_P, B, D_MODEL), jnp.float32)

    fwd = jax.jit(decoder_layer_forward)
    out = jax.block_until_ready(fwd(tgt, memory_q, memory_p, prep))

    ref = decoder_layer_ref(tgt, memory_q, memory_p, params)
    assert out.shape == (T, B, D_MODEL)
    # bf16 matmul operands (f32 accumulation) -> tolerance loosened per review
    max_err = float(jnp.max(jnp.abs(out - ref)))
    assert jnp.allclose(out, ref, rtol=1e-2, atol=1e-2), f"mismatch vs. JAX reference: {max_err}"
    print("KERNEL_OK")
</pallas_src>

<mosaic_0001>
module attributes {stable_mosaic.version = 11 : i64} {
  func.func @_decoder_layer_kernel(%arg0: i32, %arg1: memref<16x32xf32, #tpu.memory_space<vmem>>, %arg2: memref<16x32xf32, #tpu.memory_space<vmem>>, %arg3: memref<16x32xf32, #tpu.memory_space<vmem>>, %arg4: memref<16x32xf32, #tpu.memory_space<vmem>>, %arg5: memref<16x64xf32, #tpu.memory_space<vmem>>, %arg6: memref<16x64xf32, #tpu.memory_space<vmem>>, %arg7: memref<16x64xf32, #tpu.memory_space<vmem>>, %arg8: memref<64x32xf32, #tpu.memory_space<vmem>>, %arg9: memref<64x32xf32, #tpu.memory_space<vmem>>, %arg10: memref<64x32xf32, #tpu.memory_space<vmem>>, %arg11: memref<4x32x32xbf16, #tpu.memory_space<vmem>>, %arg12: memref<4x32xf32, #tpu.memory_space<vmem>>, %arg13: memref<4x32x32xbf16, #tpu.memory_space<vmem>>, %arg14: memref<4x32xf32, #tpu.memory_space<vmem>>, %arg15: memref<4x32x32xbf16, #tpu.memory_space<vmem>>, %arg16: memref<4x32xf32, #tpu.memory_space<vmem>>, %arg17: memref<4x32xf32, #tpu.memory_space<vmem>>, %arg18: memref<4x32xf32, #tpu.memory_space<vmem>>, %arg19: memref<32x256xbf16, #tpu.memory_space<vmem>>, %arg20: memref<1x256xf32, #tpu.memory_space<vmem>>, %arg21: memref<256x32xbf16, #tpu.memory_space<vmem>>, %arg22: memref<1x32xf32, #tpu.memory_space<vmem>>, %arg23: memref<16x32xf32, #tpu.memory_space<vmem>>) attributes {dimension_semantics = [#tpu.dimension_semantics<parallel>], iteration_bounds = array<i64: 1>, scalar_prefetch = 0 : i64, scratch_operands = 0 : i64, tpu.core_type = #tpu.core_type<tc>, window_params = [{transform_indices = @transform_0, window_bounds = array<i64: 16, 32>}, {pipeline_mode = #tpu.pipeline_mode<synchronous>, transform_indices = @transform_1, window_bounds = array<i64: 16, 32>}, {pipeline_mode = #tpu.pipeline_mode<synchronous>, transform_indices = @transform_2, window_bounds = array<i64: 16, 32>}, {pipeline_mode = #tpu.pipeline_mode<synchronous>, transform_indices = @transform_3, window_bounds = array<i64: 16, 32>}, {transform_indices = @transform_4, window_bounds = array<i64: 16, 64>}, {transform_indices = @transform_5, window_bounds = array<i64: 16, 64>}, {transform_indices = @transform_6, window_bounds = array<i64: 16, 64>}, {pipeline_mode = #tpu.pipeline_mode<synchronous>, transform_indices = @transform_7, window_bounds = array<i64: 64, 32>}, {pipeline_mode = #tpu.pipeline_mode<synchronous>, transform_indices = @transform_8, window_bounds = array<i64: 64, 32>}, {pipeline_mode = #tpu.pipeline_mode<synchronous>, transform_indices = @transform_9, window_bounds = array<i64: 64, 32>}, {pipeline_mode = #tpu.pipeline_mode<synchronous>, transform_indices = @transform_10, window_bounds = array<i64: 4, 32, 32>}, {pipeline_mode = #tpu.pipeline_mode<synchronous>, transform_indices = @transform_11, window_bounds = array<i64: 4, 32>}, {pipeline_mode = #tpu.pipeline_mode<synchronous>, transform_indices = @transform_12, window_bounds = array<i64: 4, 32, 32>}, {pipeline_mode = #tpu.pipeline_mode<synchronous>, transform_indices = @transform_13, window_bounds = array<i64: 4, 32>}, {pipeline_mode = #tpu.pipeline_mode<synchronous>, transform_indices = @transform_14, window_bounds = array<i64: 4, 32, 32>}, {pipeline_mode = #tpu.pipeline_mode<synchronous>, transform_indices = @transform_15, window_bounds = array<i64: 4, 32>}, {pipeline_mode = #tpu.pipeline_mode<synchronous>, transform_indices = @transform_16, window_bounds = array<i64: 4, 32>}, {pipeline_mode = #tpu.pipeline_mode<synchronous>, transform_indices = @transform_17, window_bounds = array<i64: 4, 32>}, {pipeline_mode = #tpu.pipeline_mode<synchronous>, transform_indices = @transform_18, window_bounds = array<i64: 32, 256>}, {pipeline_mode = #tpu.pipeline_mode<synchronous>, transform_indices = @transform_19, window_bounds = array<i64: 1, 256>}, {pipeline_mode = #tpu.pipeline_mode<synchronous>, transform_indices = @transform_20, window_bounds = array<i64: 256, 32>}, {pipeline_mode = #tpu.pipeline_mode<synchronous>, transform_indices = @transform_21, window_bounds = array<i64: 1, 32>}, {transform_indices = @transform_22, window_bounds = array<i64: 16, 32>}]} {
    %c0 = arith.constant 0 : index
    %c0_0 = arith.constant 0 : index
    %0 = vector.load %arg1[%c0, %c0_0] : memref<16x32xf32, #tpu.memory_space<vmem>>, vector<16x32xf32>
    %c0_1 = arith.constant 0 : index
    %c0_2 = arith.constant 0 : index
    %1 = vector.load %arg2[%c0_1, %c0_2] : memref<16x32xf32, #tpu.memory_space<vmem>>, vector<16x32xf32>
    %2 = arith.truncf %1 : vector<16x32xf32> to vector<16x32xbf16>
    %c0_3 = arith.constant 0 : index
    %c0_4 = arith.constant 0 : index
    %3 = vector.load %arg3[%c0_3, %c0_4] : memref<16x32xf32, #tpu.memory_space<vmem>>, vector<16x32xf32>
    %4 = arith.truncf %3 : vector<16x32xf32> to vector<16x32xbf16>
    %c0_5 = arith.constant 0 : index
    %c0_6 = arith.constant 0 : index
    %5 = vector.load %arg4[%c0_5, %c0_6] : memref<16x32xf32, #tpu.memory_space<vmem>>, vector<16x32xf32>
    %6 = arith.truncf %5 : vector<16x32xf32> to vector<16x32xbf16>
    %c0_7 = arith.constant 0 : index
    %c0_8 = arith.constant 0 : index
    %7 = vector.load %arg8[%c0_7, %c0_8] : memref<64x32xf32, #tpu.memory_space<vmem>>, vector<64x32xf32>
    %c0_9 = arith.constant 0 : index
    %c0_10 = arith.constant 0 : index
    %8 = vector.load %arg5[%c0_9, %c0_10] : memref<16x64xf32, #tpu.memory_space<vmem>>, vector<16x64xf32>
    %9 = arith.truncf %0 : vector<16x32xf32> to vector<16x32xbf16>
    %c0_11 = arith.constant 0 : index
    %c0_12 = arith.constant 0 : index
    %c0_13 = arith.constant 0 : index
    %10 = vector.load %arg11[%c0_11, %c0_12, %c0_13] : memref<4x32x32xbf16, #tpu.memory_space<vmem>>, vector<1x32x32xbf16>
    %11 = vector.shape_cast %10 : vector<1x32x32xbf16> to vector<32x32xbf16>
    %cst = arith.constant dense<0.000000e+00> : vector<16x32xf32>
    %12 = tpu.matmul %9, %11, %cst {dimension_numbers = #tpu.dot_dimension_numbers<[1], [0], [0], [1], [0, 0, 1, 1], [], []>} : vector<16x32xbf16>, vector<32x32xbf16>, vector<16x32xf32> -> vector<16x32xf32>
    %c0_14 = arith.constant 0 : index
    %c0_15 = arith.constant 0 : index
    %13 = vector.load %arg12[%c0_14, %c0_15] : memref<4x32xf32, #tpu.memory_space<vmem>>, vector<1x32xf32>
    %14 = vector.broadcast %13 : vector<1x32xf32> to vector<16x32xf32>
    %15 = arith.addf %12, %14 : vector<16x32xf32>
    %c1 = arith.constant 1 : index
    %c0_16 = arith.constant 0 : index
    %c0_17 = arith.constant 0 : index
    %16 = vector.load %arg11[%c1, %c0_16, %c0_17] : memref<4x32x32xbf16, #tpu.memory_space<vmem>>, vector<1x32x32xbf16>
    %17 = vector.shape_cast %16 : vector<1x32x32xbf16> to vector<32x32xbf16>
    %cst_18 = arith.constant dense<0.000000e+00> : vector<16x32xf32>
    %18 = tpu.matmul %2, %17, %cst_18 {dimension_numbers = #tpu.dot_dimension_numbers<[1], [0], [0], [1], [0, 0, 1, 1], [], []>} : vector<16x32xbf16>, vector<32x32xbf16>, vector<16x32xf32> -> vector<16x32xf32>
    %c1_19 = arith.constant 1 : index
    %c0_20 = arith.constant 0 : index
    %19 = vector.load %arg12[%c1_19, %c0_20] : memref<4x32xf32, #tpu.memory_space<vmem>>, vector<1x32xf32>
    %20 = vector.broadcast %19 : vector<1x32xf32> to vector<16x32xf32>
    %21 = arith.addf %18, %20 : vector<16x32xf32>
    %c2 = arith.constant 2 : index
    %c0_21 = arith.constant 0 : index
    %c0_22 = arith.constant 0 : index
    %22 = vector.load %arg11[%c2, %c0_21, %c0_22] : memref<4x32x32xbf16, #tpu.memory_space<vmem>>, vector<1x32x32xbf16>
    %23 = vector.shape_cast %22 : vector<1x32x32xbf16> to vector<32x32xbf16>
    %cst_23 = arith.constant dense<0.000000e+00> : vector<16x32xf32>
    %24 = tpu.matmul %2, %23, %cst_23 {dimension_numbers = #tpu.dot_dimension_numbers<[1], [0], [0], [1], [0, 0, 1, 1], [], []>} : vector<16x32xbf16>, vector<32x32xbf16>, vector<16x32xf32> -> vector<16x32xf32>
    %c2_24 = arith.constant 2 : index
    %c0_25 = arith.constant 0 : index
    %25 = vector.load %arg12[%c2_24, %c0_25] : memref<4x32xf32, #tpu.memory_space<vmem>>, vector<1x32xf32>
    %26 = vector.broadcast %25 : vector<1x32xf32> to vector<16x32xf32>
    %27 = arith.addf %24, %26 : vector<16x32xf32>
    %28 = tpu.concatenate %21, %21, %21, %21 in 0 : vector<16x32xf32>, vector<16x32xf32>, vector<16x32xf32>, vector<16x32xf32> -> vector<64x32xf32>
    %29 = arith.mulf %28, %7 : vector<64x32xf32>
    %30 = arith.truncf %29 : vector<64x32xf32> to vector<64x32xbf16>
    %31 = tpu.concatenate %27, %27, %27, %27 in 0 : vector<16x32xf32>, vector<16x32xf32>, vector<16x32xf32>, vector<16x32xf32> -> vector<64x32xf32>
    %32 = arith.mulf %31, %7 : vector<64x32xf32>
    %33 = arith.truncf %32 : vector<64x32xf32> to vector<64x32xbf16>
    %34 = arith.truncf %15 : vector<16x32xf32> to vector<16x32xbf16>
    %cst_26 = arith.constant dense<0.000000e+00> : vector<16x64xf32>
    %35 = tpu.matmul %34, %30, %cst_26 {dimension_numbers = #tpu.dot_dimension_numbers<[1], [1], [0], [0], [0, 0, 1, 0], [], []>} : vector<16x32xbf16>, vector<64x32xbf16>, vector<16x64xf32> -> vector<16x64xf32>
    %36 = arith.addf %35, %8 : vector<16x64xf32>
    %cst_27 = arith.constant dense<0xFF800000> : vector<16xf32>
    %37 = vector.multi_reduction <maximumf>, %36, %cst_27 [1] : vector<16x64xf32> to vector<16xf32>
    %38 = vector.shape_cast %37 : vector<16xf32> to vector<16x1xf32>
    %39 = vector.broadcast %38 : vector<16x1xf32> to vector<16x64xf32>
    %40 = arith.subf %36, %39 : vector<16x64xf32>
    %41 = math.exp %40 : vector<16x64xf32>
    %42 = arith.truncf %41 : vector<16x64xf32> to vector<16x64xbf16>
    %cst_28 = arith.constant dense<0.000000e+00> : vector<16x32xf32>
    %43 = tpu.matmul %42, %33, %cst_28 {dimension_numbers = #tpu.dot_dimension_numbers<[1], [0], [0], [1], [0, 0, 1, 1], [], []>} : vector<16x64xbf16>, vector<64x32xbf16>, vector<16x32xf32> -> vector<16x32xf32>
    %44 = arith.truncf %7 : vector<64x32xf32> to vector<64x32xbf16>
    %cst_29 = arith.constant dense<0.000000e+00> : vector<16x32xf32>
    %45 = tpu.matmul %42, %44, %cst_29 {dimension_numbers = #tpu.dot_dimension_numbers<[1], [0], [0], [1], [0, 0, 1, 1], [], []>} : vector<16x64xbf16>, vector<64x32xbf16>, vector<16x32xf32> -> vector<16x32xf32>
    %cst_30 = arith.constant 1.000000e-30 : f32
    %46 = vector.broadcast %cst_30 : f32 to vector<16x32xf32>
    %47 = arith.addf %45, %46 : vector<16x32xf32>
    %48 = tpu.reciprocal %47 {approx = true} : vector<16x32xf32> -> vector<16x32xf32>
    %49 = arith.mulf %43, %48 : vector<16x32xf32>
    %50 = arith.truncf %49 : vector<16x32xf32> to vector<16x32xbf16>
    %c3 = arith.constant 3 : index
    %c0_31 = arith.constant 0 : index
    %c0_32 = arith.constant 0 : index
    %51 = vector.load %arg11[%c3, %c0_31, %c0_32] : memref<4x32x32xbf16, #tpu.memory_space<vmem>>, vector<1x32x32xbf16>
    %52 = vector.shape_cast %51 : vector<1x32x32xbf16> to vector<32x32xbf16>
    %cst_33 = arith.constant dense<0.000000e+00> : vector<16x32xf32>
    %53 = tpu.matmul %50, %52, %cst_33 {dimension_numbers = #tpu.dot_dimension_numbers<[1], [0], [0], [1], [0, 0, 1, 1], [], []>} : vector<16x32xbf16>, vector<32x32xbf16>, vector<16x32xf32> -> vector<16x32xf32>
    %c3_34 = arith.constant 3 : index
    %c0_35 = arith.constant 0 : index
    %54 = vector.load %arg12[%c3_34, %c0_35] : memref<4x32xf32, #tpu.memory_space<vmem>>, vector<1x32xf32>
    %55 = vector.broadcast %54 : vector<1x32xf32> to vector<16x32xf32>
    %56 = arith.addf %53, %55 : vector<16x32xf32>
    %c0_36 = arith.constant 0 : index
    %c0_37 = arith.constant 0 : index
    %57 = vector.load %arg17[%c0_36, %c0_37] : memref<4x32xf32, #tpu.memory_space<vmem>>, vector<1x32xf32>
    %c0_38 = arith.constant 0 : index
    %c0_39 = arith.constant 0 : index
    %58 = vector.load %arg18[%c0_38, %c0_39] : memref<4x32xf32, #tpu.memory_space<vmem>>, vector<1x32xf32>
    %59 = arith.addf %0, %56 : vector<16x32xf32>
    %cst_40 = arith.constant dense<0.000000e+00> : vector<16xf32>
    %60 = vector.multi_reduction <add>, %59, %cst_40 [1] : vector<16x32xf32> to vector<16xf32>
    %61 = vector.shape_cast %60 : vector<16xf32> to vector<16x1xf32>
    %cst_41 = arith.constant 3.200000e+01 : f32
    %62 = vector.broadcast %cst_41 : f32 to vector<16x1xf32>
    %63 = arith.divf %61, %62 : vector<16x1xf32>
    %64 = vector.broadcast %63 : vector<16x1xf32> to vector<16x32xf32>
    %65 = arith.subf %59, %64 : vector<16x32xf32>
    %66 = arith.mulf %65, %65 : vector<16x32xf32>
    %cst_42 = arith.constant dense<0.000000e+00> : vector<16xf32>
    %67 = vector.multi_reduction <add>, %66, %cst_42 [1] : vector<16x32xf32> to vector<16xf32>
    %68 = vector.shape_cast %67 : vector<16xf32> to vector<16x1xf32>
    %cst_43 = arith.constant 3.200000e+01 : f32
    %69 = vector.broadcast %cst_43 : f32 to vector<16x1xf32>
    %70 = arith.divf %68, %69 : vector<16x1xf32>
    %71 = vector.broadcast %63 : vector<16x1xf32> to vector<16x32xf32>
    %72 = arith.subf %59, %71 : vector<16x32xf32>
    %cst_44 = arith.constant 9.99999974E-6 : f32
    %73 = vector.broadcast %cst_44 : f32 to vector<16x1xf32>
    %74 = arith.addf %70, %73 : vector<16x1xf32>
    %75 = math.rsqrt %74 : vector<16x1xf32>
    %76 = vector.broadcast %75 : vector<16x1xf32> to vector<16x32xf32>
    %77 = arith.mulf %72, %76 : vector<16x32xf32>
    %78 = vector.broadcast %57 : vector<1x32xf32> to vector<16x32xf32>
    %79 = arith.mulf %77, %78 : vector<16x32xf32>
    %80 = vector.broadcast %58 : vector<1x32xf32> to vector<16x32xf32>
    %81 = arith.addf %79, %80 : vector<16x32xf32>
    %c0_45 = arith.constant 0 : index
    %c0_46 = arith.constant 0 : index
    %82 = vector.load %arg9[%c0_45, %c0_46] : memref<64x32xf32, #tpu.memory_space<vmem>>, vector<64x32xf32>
    %c0_47 = arith.constant 0 : index
    %c0_48 = arith.constant 0 : index
    %83 = vector.load %arg6[%c0_47, %c0_48] : memref<16x64xf32, #tpu.memory_space<vmem>>, vector<16x64xf32>
    %84 = arith.truncf %81 : vector<16x32xf32> to vector<16x32xbf16>
    %c0_49 = arith.constant 0 : index
    %c0_50 = arith.constant 0 : index
    %c0_51 = arith.constant 0 : index
    %85 = vector.load %arg13[%c0_49, %c0_50, %c0_51] : memref<4x32x32xbf16, #tpu.memory_space<vmem>>, vector<1x32x32xbf16>
    %86 = vector.shape_cast %85 : vector<1x32x32xbf16> to vector<32x32xbf16>
    %cst_52 = arith.constant dense<0.000000e+00> : vector<16x32xf32>
    %87 = tpu.matmul %84, %86, %cst_52 {dimension_numbers = #tpu.dot_dimension_numbers<[1], [0], [0], [1], [0, 0, 1, 1], [], []>} : vector<16x32xbf16>, vector<32x32xbf16>, vector<16x32xf32> -> vector<16x32xf32>
    %c0_53 = arith.constant 0 : index
    %c0_54 = arith.constant 0 : index
    %88 = vector.load %arg14[%c0_53, %c0_54] : memref<4x32xf32, #tpu.memory_space<vmem>>, vector<1x32xf32>
    %89 = vector.broadcast %88 : vector<1x32xf32> to vector<16x32xf32>
    %90 = arith.addf %87, %89 : vector<16x32xf32>
    %c1_55 = arith.constant 1 : index
    %c0_56 = arith.constant 0 : index
    %c0_57 = arith.constant 0 : index
    %91 = vector.load %arg13[%c1_55, %c0_56, %c0_57] : memref<4x32x32xbf16, #tpu.memory_space<vmem>>, vector<1x32x32xbf16>
    %92 = vector.shape_cast %91 : vector<1x32x32xbf16> to vector<32x32xbf16>
    %cst_58 = arith.constant dense<0.000000e+00> : vector<16x32xf32>
    %93 = tpu.matmul %4, %92, %cst_58 {dimension_numbers = #tpu.dot_dimension_numbers<[1], [0], [0], [1], [0, 0, 1, 1], [], []>} : vector<16x32xbf16>, vector<32x32xbf16>, vector<16x32xf32> -> vector<16x32xf32>
    %c1_59 = arith.constant 1 : index
    %c0_60 = arith.constant 0 : index
    %94 = vector.load %arg14[%c1_59, %c0_60] : memref<4x32xf32, #tpu.memory_space<vmem>>, vector<1x32xf32>
    %95 = vector.broadcast %94 : vector<1x32xf32> to vector<16x32xf32>
    %96 = arith.addf %93, %95 : vector<16x32xf32>
    %c2_61 = arith.constant 2 : index
    %c0_62 = arith.constant 0 : index
    %c0_63 = arith.constant 0 : index
    %97 = vector.load %arg13[%c2_61, %c0_62, %c0_63] : memref<4x32x32xbf16, #tpu.memory_space<vmem>>, vector<1x32x32xbf16>
    %98 = vector.shape_cast %97 : vector<1x32x32xbf16> to vector<32x32xbf16>
    %cst_64 = arith.constant dense<0.000000e+00> : vector<16x32xf32>
    %99 = tpu.matmul %4, %98, %cst_64 {dimension_numbers = #tpu.dot_dimension_numbers<[1], [0], [0], [1], [0, 0, 1, 1], [], []>} : vector<16x32xbf16>, vector<32x32xbf16>, vector<16x32xf32> -> vector<16x32xf32>
    %c2_65 = arith.constant 2 : index
    %c0_66 = arith.constant 0 : index
    %100 = vector.load %arg14[%c2_65, %c0_66] : memref<4x32xf32, #tpu.memory_space<vmem>>, vector<1x32xf32>
    %101 = vector.broadcast %100 : vector<1x32xf32> to vector<16x32xf32>
    %102 = arith.addf %99, %101 : vector<16x32xf32>
    %103 = tpu.concatenate %96, %96, %96, %96 in 0 : vector<16x32xf32>, vector<16x32xf32>, vector<16x32xf32>, vector<16x32xf32> -> vector<64x32xf32>
    %104 = arith.mulf %103, %82 : vector<64x32xf32>
    %105 = arith.truncf %104 : vector<64x32xf32> to vector<64x32xbf16>
    %106 = tpu.concatenate %102, %102, %102, %102 in 0 : vector<16x32xf32>, vector<16x32xf32>, vector<16x32xf32>, vector<16x32xf32> -> vector<64x32xf32>
    %107 = arith.mulf %106, %82 : vector<64x32xf32>
    %108 = arith.truncf %107 : vector<64x32xf32> to vector<64x32xbf16>
    %109 = arith.truncf %90 : vector<16x32xf32> to vector<16x32xbf16>
    %cst_67 = arith.constant dense<0.000000e+00> : vector<16x64xf32>
    %110 = tpu.matmul %109, %105, %cst_67 {dimension_numbers = #tpu.dot_dimension_numbers<[1], [1], [0], [0], [0, 0, 1, 0], [], []>} : vector<16x32xbf16>, vector<64x32xbf16>, vector<16x64xf32> -> vector<16x64xf32>
    %111 = arith.addf %110, %83 : vector<16x64xf32>
    %cst_68 = arith.constant dense<0xFF800000> : vector<16xf32>
    %112 = vector.multi_reduction <maximumf>, %111, %cst_68 [1] : vector<16x64xf32> to vector<16xf32>
    %113 = vector.shape_cast %112 : vector<16xf32> to vector<16x1xf32>
    %114 = vector.broadcast %113 : vector<16x1xf32> to vector<16x64xf32>
    %115 = arith.subf %111, %114 : vector<16x64xf32>
    %116 = math.exp %115 : vector<16x64xf32>
    %117 = arith.truncf %116 : vector<16x64xf32> to vector<16x64xbf16>
    %cst_69 = arith.constant dense<0.000000e+00> : vector<16x32xf32>
    %118 = tpu.matmul %117, %108, %cst_69 {dimension_numbers = #tpu.dot_dimension_numbers<[1], [0], [0], [1], [0, 0, 1, 1], [], []>} : vector<16x64xbf16>, vector<64x32xbf16>, vector<16x32xf32> -> vector<16x32xf32>
    %119 = arith.truncf %82 : vector<64x32xf32> to vector<64x32xbf16>
    %cst_70 = arith.constant dense<0.000000e+00> : vector<16x32xf32>
    %120 = tpu.matmul %117, %119, %cst_70 {dimension_numbers = #tpu.dot_dimension_numbers<[1], [0], [0], [1], [0, 0, 1, 1], [], []>} : vector<16x64xbf16>, vector<64x32xbf16>, vector<16x32xf32> -> vector<16x32xf32>
    %cst_71 = arith.constant 1.000000e-30 : f32
    %121 = vector.broadcast %cst_71 : f32 to vector<16x32xf32>
    %122 = arith.addf %120, %121 : vector<16x32xf32>
    %123 = tpu.reciprocal %122 {approx = true} : vector<16x32xf32> -> vector<16x32xf32>
    %124 = arith.mulf %118, %123 : vector<16x32xf32>
    %125 = arith.truncf %124 : vector<16x32xf32> to vector<16x32xbf16>
    %c3_72 = arith.constant 3 : index
    %c0_73 = arith.constant 0 : index
    %c0_74 = arith.constant 0 : index
    %126 = vector.load %arg13[%c3_72, %c0_73, %c0_74] : memref<4x32x32xbf16, #tpu.memory_space<vmem>>, vector<1x32x32xbf16>
    %127 = vector.shape_cast %126 : vector<1x32x32xbf16> to vector<32x32xbf16>
    %cst_75 = arith.constant dense<0.000000e+00> : vector<16x32xf32>
    %128 = tpu.matmul %125, %127, %cst_75 {dimension_numbers = #tpu.dot_dimension_numbers<[1], [0], [0], [1], [0, 0, 1, 1], [], []>} : vector<16x32xbf16>, vector<32x32xbf16>, vector<16x32xf32> -> vector<16x32xf32>
    %c3_76 = arith.constant 3 : index
    %c0_77 = arith.constant 0 : index
    %129 = vector.load %arg14[%c3_76, %c0_77] : memref<4x32xf32, #tpu.memory_space<vmem>>, vector<1x32xf32>
    %130 = vector.broadcast %129 : vector<1x32xf32> to vector<16x32xf32>
    %131 = arith.addf %128, %130 : vector<16x32xf32>
    %c1_78 = arith.constant 1 : index
    %c0_79 = arith.constant 0 : index
    %132 = vector.load %arg17[%c1_78, %c0_79] : memref<4x32xf32, #tpu.memory_space<vmem>>, vector<1x32xf32>
    %c1_80 = arith.constant 1 : index
    %c0_81 = arith.constant 0 : index
    %133 = vector.load %arg18[%c1_80, %c0_81] : memref<4x32xf32, #tpu.memory_space<vmem>>, vector<1x32xf32>
    %134 = arith.addf %81, %131 : vector<16x32xf32>
    %cst_82 = arith.constant dense<0.000000e+00> : vector<16xf32>
    %135 = vector.multi_reduction <add>, %134, %cst_82 [1] : vector<16x32xf32> to vector<16xf32>
    %136 = vector.shape_cast %135 : vector<16xf32> to vector<16x1xf32>
    %cst_83 = arith.constant 3.200000e+01 : f32
    %137 = vector.broadcast %cst_83 : f32 to vector<16x1xf32>
    %138 = arith.divf %136, %137 : vector<16x1xf32>
    %139 = vector.broadcast %138 : vector<16x1xf32> to vector<16x32xf32>
    %140 = arith.subf %134, %139 : vector<16x32xf32>
    %141 = arith.mulf %140, %140 : vector<16x32xf32>
    %cst_84 = arith.constant dense<0.000000e+00> : vector<16xf32>
    %142 = vector.multi_reduction <add>, %141, %cst_84 [1] : vector<16x32xf32> to vector<16xf32>
    %143 = vector.shape_cast %142 : vector<16xf32> to vector<16x1xf32>
    %cst_85 = arith.constant 3.200000e+01 : f32
    %144 = vector.broadcast %cst_85 : f32 to vector<16x1xf32>
    %145 = arith.divf %143, %144 : vector<16x1xf32>
    %146 = vector.broadcast %138 : vector<16x1xf32> to vector<16x32xf32>
    %147 = arith.subf %134, %146 : vector<16x32xf32>
    %cst_86 = arith.constant 9.99999974E-6 : f32
    %148 = vector.broadcast %cst_86 : f32 to vector<16x1xf32>
    %149 = arith.addf %145, %148 : vector<16x1xf32>
    %150 = math.rsqrt %149 : vector<16x1xf32>
    %151 = vector.broadcast %150 : vector<16x1xf32> to vector<16x32xf32>
    %152 = arith.mulf %147, %151 : vector<16x32xf32>
    %153 = vector.broadcast %132 : vector<1x32xf32> to vector<16x32xf32>
    %154 = arith.mulf %152, %153 : vector<16x32xf32>
    %155 = vector.broadcast %133 : vector<1x32xf32> to vector<16x32xf32>
    %156 = arith.addf %154, %155 : vector<16x32xf32>
    %c0_87 = arith.constant 0 : index
    %c0_88 = arith.constant 0 : index
    %157 = vector.load %arg10[%c0_87, %c0_88] : memref<64x32xf32, #tpu.memory_space<vmem>>, vector<64x32xf32>
    %c0_89 = arith.constant 0 : index
    %c0_90 = arith.constant 0 : index
    %158 = vector.load %arg7[%c0_89, %c0_90] : memref<16x64xf32, #tpu.memory_space<vmem>>, vector<16x64xf32>
    %159 = arith.truncf %156 : vector<16x32xf32> to vector<16x32xbf16>
    %c0_91 = arith.constant 0 : index
    %c0_92 = arith.constant 0 : index
    %c0_93 = arith.constant 0 : index
    %160 = vector.load %arg15[%c0_91, %c0_92, %c0_93] : memref<4x32x32xbf16, #tpu.memory_space<vmem>>, vector<1x32x32xbf16>
    %161 = vector.shape_cast %160 : vector<1x32x32xbf16> to vector<32x32xbf16>
    %cst_94 = arith.constant dense<0.000000e+00> : vector<16x32xf32>
    %162 = tpu.matmul %159, %161, %cst_94 {dimension_numbers = #tpu.dot_dimension_numbers<[1], [0], [0], [1], [0, 0, 1, 1], [], []>} : vector<16x32xbf16>, vector<32x32xbf16>, vector<16x32xf32> -> vector<16x32xf32>
    %c0_95 = arith.constant 0 : index
    %c0_96 = arith.constant 0 : index
    %163 = vector.load %arg16[%c0_95, %c0_96] : memref<4x32xf32, #tpu.memory_space<vmem>>, vector<1x32xf32>
    %164 = vector.broadcast %163 : vector<1x32xf32> to vector<16x32xf32>
    %165 = arith.addf %162, %164 : vector<16x32xf32>
    %c1_97 = arith.constant 1 : index
    %c0_98 = arith.constant 0 : index
    %c0_99 = arith.constant 0 : index
    %166 = vector.load %arg15[%c1_97, %c0_98, %c0_99] : memref<4x32x32xbf16, #tpu.memory_space<vmem>>, vector<1x32x32xbf16>
    %167 = vector.shape_cast %166 : vector<1x32x32xbf16> to vector<32x32xbf16>
    %cst_100 = arith.constant dense<0.000000e+00> : vector<16x32xf32>
    %168 = tpu.matmul %6, %167, %cst_100 {dimension_numbers = #tpu.dot_dimension_numbers<[1], [0], [0], [1], [0, 0, 1, 1], [], []>} : vector<16x32xbf16>, vector<32x32xbf16>, vector<16x32xf32> -> vector<16x32xf32>
    %c1_101 = arith.constant 1 : index
    %c0_102 = arith.constant 0 : index
    %169 = vector.load %arg16[%c1_101, %c0_102] : memref<4x32xf32, #tpu.memory_space<vmem>>, vector<1x32xf32>
    %170 = vector.broadcast %169 : vector<1x32xf32> to vector<16x32xf32>
    %171 = arith.addf %168, %170 : vector<16x32xf32>
    %c2_103 = arith.constant 2 : index
    %c0_104 = arith.constant 0 : index
    %c0_105 = arith.constant 0 : index
    %172 = vector.load %arg15[%c2_103, %c0_104, %c0_105] : memref<4x32x32xbf16, #tpu.memory_space<vmem>>, vector<1x32x32xbf16>
    %173 = vector.shape_cast %172 : vector<1x32x32xbf16> to vector<32x32xbf16>
    %cst_106 = arith.constant dense<0.000000e+00> : vector<16x32xf32>
    %174 = tpu.matmul %6, %173, %cst_106 {dimension_numbers = #tpu.dot_dimension_numbers<[1], [0], [0], [1], [0, 0, 1, 1], [], []>} : vector<16x32xbf16>, vector<32x32xbf16>, vector<16x32xf32> -> vector<16x32xf32>
    %c2_107 = arith.constant 2 : index
    %c0_108 = arith.constant 0 : index
    %175 = vector.load %arg16[%c2_107, %c0_108] : memref<4x32xf32, #tpu.memory_space<vmem>>, vector<1x32xf32>
    %176 = vector.broadcast %175 : vector<1x32xf32> to vector<16x32xf32>
    %177 = arith.addf %174, %176 : vector<16x32xf32>
    %178 = tpu.concatenate %171, %171, %171, %171 in 0 : vector<16x32xf32>, vector<16x32xf32>, vector<16x32xf32>, vector<16x32xf32> -> vector<64x32xf32>
    %179 = arith.mulf %178, %157 : vector<64x32xf32>
    %180 = arith.truncf %179 : vector<64x32xf32> to vector<64x32xbf16>
    %181 = tpu.concatenate %177, %177, %177, %177 in 0 : vector<16x32xf32>, vector<16x32xf32>, vector<16x32xf32>, vector<16x32xf32> -> vector<64x32xf32>
    %182 = arith.mulf %181, %157 : vector<64x32xf32>
    %183 = arith.truncf %182 : vector<64x32xf32> to vector<64x32xbf16>
    %184 = arith.truncf %165 : vector<16x32xf32> to vector<16x32xbf16>
    %cst_109 = arith.constant dense<0.000000e+00> : vector<16x64xf32>
    %185 = tpu.matmul %184, %180, %cst_109 {dimension_numbers = #tpu.dot_dimension_numbers<[1], [1], [0], [0], [0, 0, 1, 0], [], []>} : vector<16x32xbf16>, vector<64x32xbf16>, vector<16x64xf32> -> vector<16x64xf32>
    %186 = arith.addf %185, %158 : vector<16x64xf32>
    %cst_110 = arith.constant dense<0xFF800000> : vector<16xf32>
    %187 = vector.multi_reduction <maximumf>, %186, %cst_110 [1] : vector<16x64xf32> to vector<16xf32>
    %188 = vector.shape_cast %187 : vector<16xf32> to vector<16x1xf32>
    %189 = vector.broadcast %188 : vector<16x1xf32> to vector<16x64xf32>
    %190 = arith.subf %186, %189 : vector<16x64xf32>
    %191 = math.exp %190 : vector<16x64xf32>
    %192 = arith.truncf %191 : vector<16x64xf32> to vector<16x64xbf16>
    %cst_111 = arith.constant dense<0.000000e+00> : vector<16x32xf32>
    %193 = tpu.matmul %192, %183, %cst_111 {dimension_numbers = #tpu.dot_dimension_numbers<[1], [0], [0], [1], [0, 0, 1, 1], [], []>} : vector<16x64xbf16>, vector<64x32xbf16>, vector<16x32xf32> -> vector<16x32xf32>
    %194 = arith.truncf %157 : vector<64x32xf32> to vector<64x32xbf16>
    %cst_112 = arith.constant dense<0.000000e+00> : vector<16x32xf32>
    %195 = tpu.matmul %192, %194, %cst_112 {dimension_numbers = #tpu.dot_dimension_numbers<[1], [0], [0], [1], [0, 0, 1, 1], [], []>} : vector<16x64xbf16>, vector<64x32xbf16>, vector<16x32xf32> -> vector<16x32xf32>
    %cst_113 = arith.constant 1.000000e-30 : f32
    %196 = vector.broadcast %cst_113 : f32 to vector<16x32xf32>
    %197 = arith.addf %195, %196 : vector<16x32xf32>
    %198 = tpu.reciprocal %197 {approx = true} : vector<16x32xf32> -> vector<16x32xf32>
    %199 = arith.mulf %193, %198 : vector<16x32xf32>
    %200 = arith.truncf %199 : vector<16x32xf32> to vector<16x32xbf16>
    %c3_114 = arith.constant 3 : index
    %c0_115 = arith.constant 0 : index
    %c0_116 = arith.constant 0 : index
    %201 = vector.load %arg15[%c3_114, %c0_115, %c0_116] : memref<4x32x32xbf16, #tpu.memory_space<vmem>>, vector<1x32x32xbf16>
    %202 = vector.shape_cast %201 : vector<1x32x32xbf16> to vector<32x32xbf16>
    %cst_117 = arith.constant dense<0.000000e+00> : vector<16x32xf32>
    %203 = tpu.matmul %200, %202, %cst_117 {dimension_numbers = #tpu.dot_dimension_numbers<[1], [0], [0], [1], [0, 0, 1, 1], [], []>} : vector<16x32xbf16>, vector<32x32xbf16>, vector<16x32xf32> -> vector<16x32xf32>
    %c3_118 = arith.constant 3 : index
    %c0_119 = arith.constant 0 : index
    %204 = vector.load %arg16[%c3_118, %c0_119] : memref<4x32xf32, #tpu.memory_space<vmem>>, vector<1x32xf32>
    %205 = vector.broadcast %204 : vector<1x32xf32> to vector<16x32xf32>
    %206 = arith.addf %203, %205 : vector<16x32xf32>
    %c2_120 = arith.constant 2 : index
    %c0_121 = arith.constant 0 : index
    %207 = vector.load %arg17[%c2_120, %c0_121] : memref<4x32xf32, #tpu.memory_space<vmem>>, vector<1x32xf32>
    %c2_122 = arith.constant 2 : index
    %c0_123 = arith.constant 0 : index
    %208 = vector.load %arg18[%c2_122, %c0_123] : memref<4x32xf32, #tpu.memory_space<vmem>>, vector<1x32xf32>
    %209 = arith.addf %156, %206 : vector<16x32xf32>
    %cst_124 = arith.constant dense<0.000000e+00> : vector<16xf32>
    %210 = vector.multi_reduction <add>, %209, %cst_124 [1] : vector<16x32xf32> to vector<16xf32>
    %211 = vector.shape_cast %210 : vector<16xf32> to vector<16x1xf32>
    %cst_125 = arith.constant 3.200000e+01 : f32
    %212 = vector.broadcast %cst_125 : f32 to vector<16x1xf32>
    %213 = arith.divf %211, %212 : vector<16x1xf32>
    %214 = vector.broadcast %213 : vector<16x1xf32> to vector<16x32xf32>
    %215 = arith.subf %209, %214 : vector<16x32xf32>
    %216 = arith.mulf %215, %215 : vector<16x32xf32>
    %cst_126 = arith.constant dense<0.000000e+00> : vector<16xf32>
    %217 = vector.multi_reduction <add>, %216, %cst_126 [1] : vector<16x32xf32> to vector<16xf32>
    %218 = vector.shape_cast %217 : vector<16xf32> to vector<16x1xf32>
    %cst_127 = arith.constant 3.200000e+01 : f32
    %219 = vector.broadcast %cst_127 : f32 to vector<16x1xf32>
    %220 = arith.divf %218, %219 : vector<16x1xf32>
    %221 = vector.broadcast %213 : vector<16x1xf32> to vector<16x32xf32>
    %222 = arith.subf %209, %221 : vector<16x32xf32>
    %cst_128 = arith.constant 9.99999974E-6 : f32
    %223 = vector.broadcast %cst_128 : f32 to vector<16x1xf32>
    %224 = arith.addf %220, %223 : vector<16x1xf32>
    %225 = math.rsqrt %224 : vector<16x1xf32>
    %226 = vector.broadcast %225 : vector<16x1xf32> to vector<16x32xf32>
    %227 = arith.mulf %222, %226 : vector<16x32xf32>
    %228 = vector.broadcast %207 : vector<1x32xf32> to vector<16x32xf32>
    %229 = arith.mulf %227, %228 : vector<16x32xf32>
    %230 = vector.broadcast %208 : vector<1x32xf32> to vector<16x32xf32>
    %231 = arith.addf %229, %230 : vector<16x32xf32>
    %232 = arith.truncf %231 : vector<16x32xf32> to vector<16x32xbf16>
    %c0_129 = arith.constant 0 : index
    %c0_130 = arith.constant 0 : index
    %233 = vector.load %arg19[%c0_129, %c0_130] : memref<32x256xbf16, #tpu.memory_space<vmem>>, vector<32x256xbf16>
    %cst_131 = arith.constant dense<0.000000e+00> : vector<16x256xf32>
    %234 = tpu.matmul %232, %233, %cst_131 {dimension_numbers = #tpu.dot_dimension_numbers<[1], [0], [0], [1], [0, 0, 1, 1], [], []>} : vector<16x32xbf16>, vector<32x256xbf16>, vector<16x256xf32> -> vector<16x256xf32>
    %c0_132 = arith.constant 0 : index
    %c0_133 = arith.constant 0 : index
    %235 = vector.load %arg20[%c0_132, %c0_133] : memref<1x256xf32, #tpu.memory_space<vmem>>, vector<1x256xf32>
    %236 = vector.broadcast %235 : vector<1x256xf32> to vector<16x256xf32>
    %237 = arith.addf %234, %236 : vector<16x256xf32>
    %cst_134 = arith.constant 0.000000e+00 : f32
    %238 = vector.broadcast %cst_134 : f32 to vector<16x256xf32>
    %239 = arith.maximumf %237, %238 : vector<16x256xf32>
    %240 = arith.truncf %239 : vector<16x256xf32> to vector<16x256xbf16>
    %c0_135 = arith.constant 0 : index
    %c0_136 = arith.constant 0 : index
    %241 = vector.load %arg21[%c0_135, %c0_136] : memref<256x32xbf16, #tpu.memory_space<vmem>>, vector<256x32xbf16>
    %cst_137 = arith.constant dense<0.000000e+00> : vector<16x32xf32>
    %242 = tpu.matmul %240, %241, %cst_137 {dimension_numbers = #tpu.dot_dimension_numbers<[1], [0], [0], [1], [0, 0, 1, 1], [], []>} : vector<16x256xbf16>, vector<256x32xbf16>, vector<16x32xf32> -> vector<16x32xf32>
    %c0_138 = arith.constant 0 : index
    %c0_139 = arith.constant 0 : index
    %243 = vector.load %arg22[%c0_138, %c0_139] : memref<1x32xf32, #tpu.memory_space<vmem>>, vector<1x32xf32>
    %244 = vector.broadcast %243 : vector<1x32xf32> to vector<16x32xf32>
    %245 = arith.addf %242, %244 : vector<16x32xf32>
    %c3_140 = arith.constant 3 : index
    %c0_141 = arith.constant 0 : index
    %246 = vector.load %arg17[%c3_140, %c0_141] : memref<4x32xf32, #tpu.memory_space<vmem>>, vector<1x32xf32>
    %c3_142 = arith.constant 3 : index
    %c0_143 = arith.constant 0 : index
    %247 = vector.load %arg18[%c3_142, %c0_143] : memref<4x32xf32, #tpu.memory_space<vmem>>, vector<1x32xf32>
    %248 = arith.addf %231, %245 : vector<16x32xf32>
    %cst_144 = arith.constant dense<0.000000e+00> : vector<16xf32>
    %249 = vector.multi_reduction <add>, %248, %cst_144 [1] : vector<16x32xf32> to vector<16xf32>
    %250 = vector.shape_cast %249 : vector<16xf32> to vector<16x1xf32>
    %cst_145 = arith.constant 3.200000e+01 : f32
    %251 = vector.broadcast %cst_145 : f32 to vector<16x1xf32>
    %252 = arith.divf %250, %251 : vector<16x1xf32>
    %253 = vector.broadcast %252 : vector<16x1xf32> to vector<16x32xf32>
    %254 = arith.subf %248, %253 : vector<16x32xf32>
    %255 = arith.mulf %254, %254 : vector<16x32xf32>
    %cst_146 = arith.constant dense<0.000000e+00> : vector<16xf32>
    %256 = vector.multi_reduction <add>, %255, %cst_146 [1] : vector<16x32xf32> to vector<16xf32>
    %257 = vector.shape_cast %256 : vector<16xf32> to vector<16x1xf32>
    %cst_147 = arith.constant 3.200000e+01 : f32
    %258 = vector.broadcast %cst_147 : f32 to vector<16x1xf32>
    %259 = arith.divf %257, %258 : vector<16x1xf32>
    %260 = vector.broadcast %252 : vector<16x1xf32> to vector<16x32xf32>
    %261 = arith.subf %248, %260 : vector<16x32xf32>
    %cst_148 = arith.constant 9.99999974E-6 : f32
    %262 = vector.broadcast %cst_148 : f32 to vector<16x1xf32>
    %263 = arith.addf %259, %262 : vector<16x1xf32>
    %264 = math.rsqrt %263 : vector<16x1xf32>
    %265 = vector.broadcast %264 : vector<16x1xf32> to vector<16x32xf32>
    %266 = arith.mulf %261, %265 : vector<16x32xf32>
    %267 = vector.broadcast %246 : vector<1x32xf32> to vector<16x32xf32>
    %268 = arith.mulf %266, %267 : vector<16x32xf32>
    %269 = vector.broadcast %247 : vector<1x32xf32> to vector<16x32xf32>
    %270 = arith.addf %268, %269 : vector<16x32xf32>
    %c0_149 = arith.constant 0 : index
    %c0_150 = arith.constant 0 : index
    %271 = vector.load %arg23[%c0_149, %c0_150] : memref<16x32xf32, #tpu.memory_space<vmem>>, vector<16x32xf32>
    tpu.vector_store %arg23[%c0_149, %c0_150], %270 {strides = array<i32>} : memref<16x32xf32, #tpu.memory_space<vmem>>, vector<16x32xf32>,
    return
  }
  func.func @transform_0(%arg0: i32) -> (i32, i32) {
    %c0_i32 = arith.constant 0 : i32
    %c0_i32_0 = arith.constant 0 : i32
    return %arg0, %c0_i32 : i32, i32
  }
  func.func @transform_1(%arg0: i32) -> (i32, i32) {
    %c0_i32 = arith.constant 0 : i32
    %c0_i32_0 = arith.constant 0 : i32
    %c0_i32_1 = arith.constant 0 : i32
    return %c0_i32, %c0_i32_0 : i32, i32
  }
  func.func @transform_2(%arg0: i32) -> (i32, i32) {
    %c0_i32 = arith.constant 0 : i32
    %c0_i32_0 = arith.constant 0 : i32
    %c0_i32_1 = arith.constant 0 : i32
    return %c0_i32, %c0_i32_0 : i32, i32
  }
  func.func @transform_3(%arg0: i32) -> (i32, i32) {
    %c0_i32 = arith.constant 0 : i32
    %c0_i32_0 = arith.constant 0 : i32
    %c0_i32_1 = arith.constant 0 : i32
    return %c0_i32, %c0_i32_0 : i32, i32
  }
  func.func @transform_4(%arg0: i32) -> (i32, i32) {
    %c0_i32 = arith.constant 0 : i32
    %c0_i32_0 = arith.constant 0 : i32
    return %arg0, %c0_i32 : i32, i32
  }
  func.func @transform_5(%arg0: i32) -> (i32, i32) {
    %c0_i32 = arith.constant 0 : i32
    %c0_i32_0 = arith.constant 0 : i32
    return %arg0, %c0_i32 : i32, i32
  }
  func.func @transform_6(%arg0: i32) -> (i32, i32) {
    %c0_i32 = arith.constant 0 : i32
    %c0_i32_0 = arith.constant 0 : i32
    return %arg0, %c0_i32 : i32, i32
  }
  func.func @transform_7(%arg0: i32) -> (i32, i32) {
    %c0_i32 = arith.constant 0 : i32
    %c0_i32_0 = arith.constant 0 : i32
    %c0_i32_1 = arith.constant 0 : i32
    return %c0_i32, %c0_i32_0 : i32, i32
  }
  func.func @transform_8(%arg0: i32) -> (i32, i32) {
    %c0_i32 = arith.constant 0 : i32
    %c0_i32_0 = arith.constant 0 : i32
    %c0_i32_1 = arith.constant 0 : i32
    return %c0_i32, %c0_i32_0 : i32, i32
  }
  func.func @transform_9(%arg0: i32) -> (i32, i32) {
    %c0_i32 = arith.constant 0 : i32
    %c0_i32_0 = arith.constant 0 : i32
    %c0_i32_1 = arith.constant 0 : i32
    return %c0_i32, %c0_i32_0 : i32, i32
  }
  func.func @transform_10(%arg0: i32) -> (i32, i32, i32) {
    %c0_i32 = arith.constant 0 : i32
    %c0_i32_0 = arith.constant 0 : i32
    %c0_i32_1 = arith.constant 0 : i32
    %c0_i32_2 = arith.constant 0 : i32
    return %c0_i32, %c0_i32_0, %c0_i32_1 : i32, i32, i32
  }
  func.func @transform_11(%arg0: i32) -> (i32, i32) {
    %c0_i32 = arith.constant 0 : i32
    %c0_i32_0 = arith.constant 0 : i32
    %c0_i32_1 = arith.constant 0 : i32
    return %c0_i32, %c0_i32_0 : i32, i32
  }
  func.func @transform_12(%arg0: i32) -> (i32, i32, i32) {
    %c0_i32 = arith.constant 0 : i32
    %c0_i32_0 = arith.constant 0 : i32
    %c0_i32_1 = arith.constant 0 : i32
    %c0_i32_2 = arith.constant 0 : i32
    return %c0_i32, %c0_i32_0, %c0_i32_1 : i32, i32, i32
  }
  func.func @transform_13(%arg0: i32) -> (i32, i32) {
    %c0_i32 = arith.constant 0 : i32
    %c0_i32_0 = arith.constant 0 : i32
    %c0_i32_1 = arith.constant 0 : i32
    return %c0_i32, %c0_i32_0 : i32, i32
  }
  func.func @transform_14(%arg0: i32) -> (i32, i32, i32) {
    %c0_i32 = arith.constant 0 : i32
    %c0_i32_0 = arith.constant 0 : i32
    %c0_i32_1 = arith.constant 0 : i32
    %c0_i32_2 = arith.constant 0 : i32
    return %c0_i32, %c0_i32_0, %c0_i32_1 : i32, i32, i32
  }
  func.func @transform_15(%arg0: i32) -> (i32, i32) {
    %c0_i32 = arith.constant 0 : i32
    %c0_i32_0 = arith.constant 0 : i32
    %c0_i32_1 = arith.constant 0 : i32
    return %c0_i32, %c0_i32_0 : i32, i32
  }
  func.func @transform_16(%arg0: i32) -> (i32, i32) {
    %c0_i32 = arith.constant 0 : i32
    %c0_i32_0 = arith.constant 0 : i32
    %c0_i32_1 = arith.constant 0 : i32
    return %c0_i32, %c0_i32_0 : i32, i32
  }
  func.func @transform_17(%arg0: i32) -> (i32, i32) {
    %c0_i32 = arith.constant 0 : i32
    %c0_i32_0 = arith.constant 0 : i32
    %c0_i32_1 = arith.constant 0 : i32
    return %c0_i32, %c0_i32_0 : i32, i32
  }
  func.func @transform_18(%arg0: i32) -> (i32, i32) {
    %c0_i32 = arith.constant 0 : i32
    %c0_i32_0 = arith.constant 0 : i32
    %c0_i32_1 = arith.constant 0 : i32
    return %c0_i32, %c0_i32_0 : i32, i32
  }
  func.func @transform_19(%arg0: i32) -> (i32, i32) {
    %c0_i32 = arith.constant 0 : i32
    %c0_i32_0 = arith.constant 0 : i32
    %c0_i32_1 = arith.constant 0 : i32
    return %c0_i32, %c0_i32_0 : i32, i32
  }
  func.func @transform_20(%arg0: i32) -> (i32, i32) {
    %c0_i32 = arith.constant 0 : i32
    %c0_i32_0 = arith.constant 0 : i32
    %c0_i32_1 = arith.constant 0 : i32
    return %c0_i32, %c0_i32_0 : i32, i32
  }
  func.func @transform_21(%arg0: i32) -> (i32, i32) {
    %c0_i32 = arith.constant 0 : i32
    %c0_i32_0 = arith.constant 0 : i32
    %c0_i32_1 = arith.constant 0 : i32
    return %c0_i32, %c0_i32_0 : i32, i32
  }
  func.func @transform_22(%arg0: i32) -> (i32, i32) {
    %c0_i32 = arith.constant 0 : i32
    %c0_i32_0 = arith.constant 0 : i32
    return %arg0, %c0_i32 : i32, i32
  }
}

</mosaic_0001>

<llo_original>
// kernel: decoder_layer_forward.1
$region0: #{decoder_layer_forward.1}
  #allocation0 [shape = 'u32[]', space=smem, size = 0x4, offset = 0x4, fixed_abs, tag = 'smem constant byte address 0x4 - core index']
  #allocation1 [shape = 'u32[72,128]{1,0:T(1,128)}', space=vmem, size = 0x9000, scoped, tag = 'internal scratch']
  %s0 = inlined_call_operand.hbm [shape: f32[16,32], index: 0, kind: input, shape index: {}, may-alias: {0,1}]
  %s1 = inlined_call_operand.hbm [shape: f32[16,32], index: 1, kind: input, shape index: {}, may-alias: {0,1}]
  %s2 = inlined_call_operand.hbm [shape: f32[16,32], index: 2, kind: input, shape index: {}]
  %s3 = inlined_call_operand.hbm [shape: f32[16,32], index: 3, kind: input, shape index: {}]
  %s4 = inlined_call_operand.vmem [shape: f32[16,64], index: 4, kind: input, shape index: {}, may-alias: {4,5,6}]
  %s5 = inlined_call_operand.vmem [shape: f32[16,64], index: 5, kind: input, shape index: {}, may-alias: {4,5,6}]
  %s6 = inlined_call_operand.vmem [shape: f32[16,64], index: 6, kind: input, shape index: {}, may-alias: {4,5,6}]
  %s7 = inlined_call_operand.vmem [shape: f32[64,32], index: 7, kind: input, shape index: {}, may-alias: {7,8,9}]
  %s8 = inlined_call_operand.vmem [shape: f32[64,32], index: 8, kind: input, shape index: {}, may-alias: {7,8,9}]
  %s9 = inlined_call_operand.vmem [shape: f32[64,32], index: 9, kind: input, shape index: {}, may-alias: {7,8,9}]
  %s10 = inlined_call_operand.vmem [shape: bf16[4,32,32], index: 10, kind: input, shape index: {}]
  %s11 = inlined_call_operand.vmem [shape: f32[4,32], index: 11, kind: input, shape index: {}]
  %s12 = inlined_call_operand.vmem [shape: bf16[4,32,32], index: 12, kind: input, shape index: {}]
  %s13 = inlined_call_operand.vmem [shape: f32[4,32], index: 13, kind: input, shape index: {}]
  %s14 = inlined_call_operand.vmem [shape: bf16[4,32,32], index: 14, kind: input, shape index: {}]
  %s15 = inlined_call_operand.vmem [shape: f32[4,32], index: 15, kind: input, shape index: {}]
  %s16 = inlined_call_operand.vmem [shape: f32[4,32], index: 16, kind: input, shape index: {}]
  %s17 = inlined_call_operand.hbm [shape: f32[4,32], index: 17, kind: input, shape index: {}]
  %s18 = inlined_call_operand.vmem [shape: bf16[32,256], index: 18, kind: input, shape index: {}]
  %s19 = inlined_call_operand.hbm [shape: f32[1,256], index: 19, kind: input, shape index: {}]
  %s20 = inlined_call_operand.vmem [shape: bf16[256,32], index: 20, kind: input, shape index: {}]
  %s21 = inlined_call_operand.hbm [shape: f32[1,32], index: 21, kind: input, shape index: {}]
  %s22 = inlined_call_operand.hbm [shape: f32[16,32], index: 22, kind: output, shape index: {}]
  %s23 = sld [smem:[#allocation0]]
  $region126: #{decoder_layer_forward.1} parent=0
    _
  %s25 = ssub.s32 1, %s23
  %s26 = scalar_select 0, %s25, %s23
  $region1: #{decoder_layer_forward.1} parent=0
    #allocation2 [shape = 'u8[8192]{0}', space=vmem, size = 0x2000, scoped, tag = 'input window, operand 0, single buffered']
    #allocation3 [shape = 's32[1]{0}', space=sflag, size = 0x4, scoped, tag = 'scoped memory for decoder_layer_forward.1']
    #allocation4 [shape = 's32[1]{0}', space=sflag, size = 0x4, scoped, tag = 'scoped memory for decoder_layer_forward.1']
    #allocation5 [shape = 'u8[8192]{0}', space=vmem, size = 0x2000, scoped, tag = 'input window, operand 1, single buffered']
    #allocation6 [shape = 's32[1]{0}', space=sflag, size = 0x4, scoped, tag = 'scoped memory for decoder_layer_forward.1']
    #allocation7 [shape = 'u8[8192]{0}', space=vmem, size = 0x2000, scoped, tag = 'input window, operand 2, single buffered']
    #allocation8 [shape = 'u8[8192]{0}', space=vmem, size = 0x2000, scoped, tag = 'input window, operand 3, single buffered']
    #allocation9 [shape = 's32[1]{0}', space=sflag, size = 0x4, scoped, tag = 'scoped memory for decoder_layer_forward.1']
    #allocation10 [shape = 'u8[2048]{0}', space=vmem, size = 0x800, scoped, tag = 'input window, operand 17, single buffered']
    #allocation11 [shape = 'u8[1024]{0}', space=vmem, size = 0x400, scoped, tag = 'input window, operand 19, single buffered']
    #allocation12 [shape = 's32[1]{0}', space=sflag, size = 0x4, scoped, tag = 'scoped memory for decoder_layer_forward.1']
    #allocation13 [shape = 'u8[512]{0}', space=vmem, size = 0x400, scoped, tag = 'input window, operand 21, single buffered']
    #allocation14 [shape = 'u8[8192]{0}', space=vmem, size = 0x2000, scoped, tag = 'output window, operand 0, single buffered']
    %27 = vsyncpa [#allocation3], 0
    %28 = vsyncpa [#allocation6], 0
    %29 = vsyncpa [#allocation9], 0
    %30 = vsyncpa [#allocation12], 0
    %31 = vsyncpa [#allocation4], 0
    // Predicated region
    $region2: #{decoder_layer_forward.1} parent=1 // pred_check
      _
    $region3: #{decoder_layer_forward.1} parent=1 // pred_check_branch
      %33 = sbr.rel (0) target = $region5
    $region4: #{decoder_layer_forward.1} parent=1 // pred_region
      %35 = vsyncadd [#allocation3], 0
      %s36 = sshll.u32 %s0, 4
      %s37 = int_to_ptr.hbm [resolvable:$true] %s36
      %s38 = sshll.u32 [#allocation2], 4
      %s39 = int_to_ptr.vmem [resolvable:$true] %s38
      %44 = dma.hbm_to_vmem [thread:$0]  %s37, 256, %s39, [#allocation3], 128, 128, 8
    $region5: #{decoder_layer_forward.1} parent=1 // pred_fallthru
      _
    // Predicated region
    $region6: #{decoder_layer_forward.1} parent=1 // pred_check
      _
    $region7: #{decoder_layer_forward.1} parent=1 // pred_check_branch
      %46 = sbr.rel (0) target = $region9
    $region8: #{decoder_layer_forward.1} parent=1 // pred_region
      %48 = vsyncadd [#allocation6], 0
      %s49 = sshll.u32 %s1, 4
      %s50 = int_to_ptr.hbm [resolvable:$true] %s49
      %s51 = sshll.u32 [#allocation5], 4
      %s52 = int_to_ptr.vmem [resolvable:$true] %s51
      %57 = dma.hbm_to_vmem [thread:$0]  %s50, 256, %s52, [#allocation6], 128, 128, 8
    $region9: #{decoder_layer_forward.1} parent=1 // pred_fallthru
      _
    // Predicated region
    $region10: #{decoder_layer_forward.1} parent=1 // pred_check
      _
    $region11: #{decoder_layer_forward.1} parent=1 // pred_check_branch
      %59 = sbr.rel (0) target = $region13
    $region12: #{decoder_layer_forward.1} parent=1 // pred_region
      %61 = vsyncadd [#allocation6], 0
      %s62 = sshll.u32 %s2, 4
      %s63 = int_to_ptr.hbm [resolvable:$true] %s62
      %s64 = sshll.u32 [#allocation7], 4
      %s65 = int_to_ptr.vmem [resolvable:$true] %s64
      %70 = dma.hbm_to_vmem [thread:$0]  %s63, 256, %s65, [#allocation6], 128, 128, 8
    $region13: #{decoder_layer_forward.1} parent=1 // pred_fallthru
      _
    // Predicated region
    $region14: #{decoder_layer_forward.1} parent=1 // pred_check
      _
    $region15: #{decoder_layer_forward.1} parent=1 // pred_check_branch
      %72 = sbr.rel (0) target = $region17
    $region16: #{decoder_layer_forward.1} parent=1 // pred_region
      %74 = vsyncadd [#allocation9], 0
      %s75 = sshll.u32 %s3, 4
      %s76 = int_to_ptr.hbm [resolvable:$true] %s75
      %s77 = sshll.u32 [#allocation8], 4
      %s78 = int_to_ptr.vmem [resolvable:$true] %s77
      %83 = dma.hbm_to_vmem [thread:$0]  %s76, 256, %s78, [#allocation9], 128, 128, 8
    $region17: #{decoder_layer_forward.1} parent=1 // pred_fallthru
      _
    // Predicated region
    $region18: #{decoder_layer_forward.1} parent=1 // pred_check
      _
    $region19: #{decoder_layer_forward.1} parent=1 // pred_check_branch
      %85 = sbr.rel (0) target = $region21
    $region20: #{decoder_layer_forward.1} parent=1 // pred_region
      _
    $region21: #{decoder_layer_forward.1} parent=1 // pred_fallthru
      _
    // Predicated region
    $region22: #{decoder_layer_forward.1} parent=1 // pred_check
      _
    $region23: #{decoder_layer_forward.1} parent=1 // pred_check_branch
      %87 = sbr.rel (0) target = $region25
    $region24: #{decoder_layer_forward.1} parent=1 // pred_region
      _
    $region25: #{decoder_layer_forward.1} parent=1 // pred_fallthru
      _
    // Predicated region
    $region26: #{decoder_layer_forward.1} parent=1 // pred_check
      _
    $region27: #{decoder_layer_forward.1} parent=1 // pred_check_branch
      %89 = sbr.rel (0) target = $region29
    $region28: #{decoder_layer_forward.1} parent=1 // pred_region
      _
    $region29: #{decoder_layer_forward.1} parent=1 // pred_fallthru
      _
    // Predicated region
    $region30: #{decoder_layer_forward.1} parent=1 // pred_check
      _
    $region31: #{decoder_layer_forward.1} parent=1 // pred_check_branch
      %91 = sbr.rel (0) target = $region33
    $region32: #{decoder_layer_forward.1} parent=1 // pred_region
      _
    $region33: #{decoder_layer_forward.1} parent=1 // pred_fallthru
      _
    // Predicated region
    $region34: #{decoder_layer_forward.1} parent=1 // pred_check
      _
    $region35: #{decoder_layer_forward.1} parent=1 // pred_check_branch
      %93 = sbr.rel (0) target = $region37
    $region36: #{decoder_layer_forward.1} parent=1 // pred_region
      _
    $region37: #{decoder_layer_forward.1} parent=1 // pred_fallthru
      _
    // Predicated region
    $region38: #{decoder_layer_forward.1} parent=1 // pred_check
      _
    $region39: #{decoder_layer_forward.1} parent=1 // pred_check_branch
      %95 = sbr.rel (0) target = $region41
    $region40: #{decoder_layer_forward.1} parent=1 // pred_region
      _
    $region41: #{decoder_layer_forward.1} parent=1 // pred_fallthru
      _
    // Predicated region
    $region42: #{decoder_layer_forward.1} parent=1 // pred_check
      _
    $region43: #{decoder_layer_forward.1} parent=1 // pred_check_branch
      %97 = sbr.rel (0) target = $region45
    $region44: #{decoder_layer_forward.1} parent=1 // pred_region
      _
    $region45: #{decoder_layer_forward.1} parent=1 // pred_fallthru
      _
    // Predicated region
    $region46: #{decoder_layer_forward.1} parent=1 // pred_check
      _
    $region47: #{decoder_layer_forward.1} parent=1 // pred_check_branch
      %99 = sbr.rel (0) target = $region49
    $region48: #{decoder_layer_forward.1} parent=1 // pred_region
      _
    $region49: #{decoder_layer_forward.1} parent=1 // pred_fallthru
      _
    // Predicated region
    $region50: #{decoder_layer_forward.1} parent=1 // pred_check
      _
    $region51: #{decoder_layer_forward.1} parent=1 // pred_check_branch
      %101 = sbr.rel (0) target = $region53
    $region52: #{decoder_layer_forward.1} parent=1 // pred_region
      _
    $region53: #{decoder_layer_forward.1} parent=1 // pred_fallthru
      _
    // Predicated region
    $region54: #{decoder_layer_forward.1} parent=1 // pred_check
      _
    $region55: #{decoder_layer_forward.1} parent=1 // pred_check_branch
      %103 = sbr.rel (0) target = $region57
    $region56: #{decoder_layer_forward.1} parent=1 // pred_region
      _
    $region57: #{decoder_layer_forward.1} parent=1 // pred_fallthru
      _
    // Predicated region
    $region58: #{decoder_layer_forward.1} parent=1 // pred_check
      _
    $region59: #{decoder_layer_forward.1} parent=1 // pred_check_branch
      %105 = sbr.rel (0) target = $region61
    $region60: #{decoder_layer_forward.1} parent=1 // pred_region
      _
    $region61: #{decoder_layer_forward.1} parent=1 // pred_fallthru
      _
    // Predicated region
    $region62: #{decoder_layer_forward.1} parent=1 // pred_check
      _
    $region63: #{decoder_layer_forward.1} parent=1 // pred_check_branch
      %107 = sbr.rel (0) target = $region65
    $region64: #{decoder_layer_forward.1} parent=1 // pred_region
      _
    $region65: #{decoder_layer_forward.1} parent=1 // pred_fallthru
      _
    // Predicated region
    $region66: #{decoder_layer_forward.1} parent=1 // pred_check
      _
    $region67: #{decoder_layer_forward.1} parent=1 // pred_check_branch
      %109 = sbr.rel (0) target = $region69
    $region68: #{decoder_layer_forward.1} parent=1 // pred_region
      _
    $region69: #{decoder_layer_forward.1} parent=1 // pred_fallthru
      _
    // Predicated region
    $region70: #{decoder_layer_forward.1} parent=1 // pred_check
      _
    $region71: #{decoder_layer_forward.1} parent=1 // pred_check_branch
      %111 = sbr.rel (0) target = $region73
    $region72: #{decoder_layer_forward.1} parent=1 // pred_region
      %113 = vsyncadd [#allocation9], 0
      %s115 = sshll.u32 %s17, 4
      %s116 = int_to_ptr.hbm [resolvable:$true] %s115
      %s117 = sshll.u32 [#allocation10], 4
      %s118 = int_to_ptr.vmem [resolvable:$true] %s117
      %120 = dma.hbm_to_vmem [thread:$0]  %s116, 64, %s118, [#allocation9]
    $region73: #{decoder_layer_forward.1} parent=1 // pred_fallthru
      _
    // Predicated region
    $region74: #{decoder_layer_forward.1} parent=1 // pred_check
      _
    $region75: #{decoder_layer_forward.1} parent=1 // pred_check_branch
      %122 = sbr.rel (0) target = $region77
    $region76: #{decoder_layer_forward.1} parent=1 // pred_region
      _
    $region77: #{decoder_layer_forward.1} parent=1 // pred_fallthru
      _
    // Predicated region
    $region78: #{decoder_layer_forward.1} parent=1 // pred_check
      _
    $region79: #{decoder_layer_forward.1} parent=1 // pred_check_branch
      %124 = sbr.rel (0) target = $region81
    $region80: #{decoder_layer_forward.1} parent=1 // pred_region
      %126 = vsyncadd [#allocation12], 0
      %s128 = sshll.u32 %s19, 4
      %s129 = int_to_ptr.hbm [resolvable:$true] %s128
      %s130 = sshll.u32 [#allocation11], 4
      %s131 = int_to_ptr.vmem [resolvable:$true] %s130
      %133 = dma.hbm_to_vmem [thread:$0]  %s129, 32, %s131, [#allocation12]
    $region81: #{decoder_layer_forward.1} parent=1 // pred_fallthru
      _
    // Predicated region
    $region82: #{decoder_layer_forward.1} parent=1 // pred_check
      _
    $region83: #{decoder_layer_forward.1} parent=1 // pred_check_branch
      %135 = sbr.rel (0) target = $region85
    $region84: #{decoder_layer_forward.1} parent=1 // pred_region
      _
    $region85: #{decoder_layer_forward.1} parent=1 // pred_fallthru
      _
    // Predicated region
    $region86: #{decoder_layer_forward.1} parent=1 // pred_check
      _
    $region87: #{decoder_layer_forward.1} parent=1 // pred_check_branch
      %137 = sbr.rel (0) target = $region89
    $region88: #{decoder_layer_forward.1} parent=1 // pred_region
      %139 = vsyncadd [#allocation12], 0
      %s141 = sshll.u32 %s21, 4
      %s142 = int_to_ptr.hbm [resolvable:$true] %s141
      %s143 = sshll.u32 [#allocation13], 4
      %s144 = int_to_ptr.vmem [resolvable:$true] %s143
      %146 = dma.hbm_to_vmem [thread:$0]  %s142, 16, %s144, [#allocation12]
    $region89: #{decoder_layer_forward.1} parent=1 // pred_fallthru
      _
    // Predicated region
    $region90: #{decoder_layer_forward.1} parent=1 // pred_check
      _
    $region91: #{decoder_layer_forward.1} parent=1 // pred_check_branch
      %148 = sbr.rel (0) target = $region93
    $region92: #{decoder_layer_forward.1} parent=1 // pred_region
      %150 = dma.done [#allocation3], 256
    $region93: #{decoder_layer_forward.1} parent=1 // pred_fallthru
      _
    // Predicated region
    $region94: #{decoder_layer_forward.1} parent=1 // pred_check
      _
    $region95: #{decoder_layer_forward.1} parent=1 // pred_check_branch
      %152 = sbr.rel (0) target = $region97
    $region96: #{decoder_layer_forward.1} parent=1 // pred_region
      %154 = dma.done [#allocation6], 256
    $region97: #{decoder_layer_forward.1} parent=1 // pred_fallthru
      _
    // Predicated region
    $region98: #{decoder_layer_forward.1} parent=1 // pred_check
      _
    $region99: #{decoder_layer_forward.1} parent=1 // pred_check_branch
      %156 = sbr.rel (0) target = $region101
    $region100: #{decoder_layer_forward.1} parent=1 // pred_region
      %158 = dma.done [#allocation6], 256
    $region101: #{decoder_layer_forward.1} parent=1 // pred_fallthru
      _
    // Predicated region
    $region102: #{decoder_layer_forward.1} parent=1 // pred_check
      _
    $region103: #{decoder_layer_forward.1} parent=1 // pred_check_branch
      %160 = sbr.rel (0) target = $region105
    $region104: #{decoder_layer_forward.1} parent=1 // pred_region
      %162 = dma.done [#allocation9], 256
    $region105: #{decoder_layer_forward.1} parent=1 // pred_fallthru
      _
    // Predicated region
    $region106: #{decoder_layer_forward.1} parent=1 // pred_check
      _
    $region107: #{decoder_layer_forward.1} parent=1 // pred_check_branch
      %164 = sbr.rel (0) target = $region109
    $region108: #{decoder_layer_forward.1} parent=1 // pred_region
      %166 = dma.done [#allocation9], 64
    $region109: #{decoder_layer_forward.1} parent=1 // pred_fallthru
      _
    // Predicated region
    $region110: #{decoder_layer_forward.1} parent=1 // pred_check
      _
    $region111: #{decoder_layer_forward.1} parent=1 // pred_check_branch
      %168 = sbr.rel (0) target = $region113
    $region112: #{decoder_layer_forward.1} parent=1 // pred_region
      %170 = dma.done [#allocation12], 32
    $region113: #{decoder_layer_forward.1} parent=1 // pred_fallthru
      _
    // Predicated region
    $region114: #{decoder_layer_forward.1} parent=1 // pred_check
      _
    $region115: #{decoder_layer_forward.1} parent=1 // pred_check_branch
      %172 = sbr.rel (0) target = $region117
    $region116: #{decoder_layer_forward.1} parent=1 // pred_region
      %174 = dma.done [#allocation12], 16
    $region117: #{decoder_layer_forward.1} parent=1 // pred_fallthru
      _
    %v176 = vld [vmem:[#allocation2] sm:$0xff]
    %v177 = vld [vmem:[#allocation2 + $0x8] sm:$0xff]
    %v178 = vld [vmem:[#allocation5] sm:$0xff]
    %v179 = vld [vmem:[#allocation5 + $0x8] sm:$0xff]
    %v180 = vpack.c.bf16 %v179, %v178
    %v181 = vld [vmem:[#allocation7] sm:$0xff]
    %v182 = vld [vmem:[#allocation7 + $0x8] sm:$0xff]
    %v183 = vpack.c.bf16 %v182, %v181
    %v184 = vld [vmem:[#allocation8] sm:$0xff]
    %v185 = vld [vmem:[#allocation8 + $0x8] sm:$0xff]
    %v186 = vpack.c.bf16 %v185, %v184
    %v187 = vld [vmem:[%s7] sm:$0xff]
    %v188 = vld [vmem:[%s7 + $0x8] sm:$0xff]
    %v189 = vld [vmem:[%s7 + $0x10] sm:$0xff]
    %v190 = vld [vmem:[%s7 + $0x18] sm:$0xff]
    %v191 = vld [vmem:[%s7 + $0x20] sm:$0xff]
    %v192 = vld [vmem:[%s7 + $0x28] sm:$0xff]
    %v193 = vld [vmem:[%s7 + $0x30] sm:$0xff]
    %v194 = vld [vmem:[%s7 + $0x38] sm:$0xff]
    %v195 = vld [vmem:[%s4] sm:$0xff]
    %v196 = vld [vmem:[%s4 + $0x8] sm:$0xff]
    %v197 = vpack.c.bf16 %v177, %v176
    %v198 = vld [vmem:[%s10] sm:$0xf]
    %v199 = vld [vmem:[%s10 + $0x4] sm:$0xf]
    %v200 = vld [vmem:[%s10 + $0x8] sm:$0xf]
    %v201 = vld [vmem:[%s10 + $0xc] sm:$0xf]
    %v202 = vld [vmem:[%s11] sm:$0x1]
    %v203 = vperm.slane %v202, 0
    %v208 = vunpack.c.l.b16 %v198
    %v209 = vunpack.c.l.b16 %v199
    %v210 = vunpack.c.l.b16 %v200
    %v211 = vunpack.c.l.b16 %v201
    %v212 = vpack.c.b16 %v209, %v208
    %v213 = vpack.c.b16 %v211, %v210
    %vm216 = vcmask 261120
    %v218 = vsel %vm216, %v197, 0
    %220 = vmatpush.bf16.msra.mxu0 0
    %221 = vmatpush.bf16.msra.mxu0 0
    %222 = vmatpush.bf16.msra.mxu0 0
    %223 = vmatpush.bf16.msra.mxu0 0
    %224 = vmatpush.bf16.msra.mxu0 0
    %225 = vmatpush.bf16.msra.mxu0 0
    %226 = vmatpush.bf16.msra.mxu0 %v213
    %227 = vmatpush.bf16.msra.mxu0 %v212
    %228 = vmatmul.bf16.gmra.mxu0 %v218
    %v229 = vpop.f32.mrf.mxu0
    %v230 = vadd.f32 %v203, %v229
    %v231 = vpop.f32.mrf.mxu0
    %v232 = vadd.f32 %v203, %v231
    %233 = vdwg.mxu0
    %s234 = scalar_lea.vmem %s10, 16
    %v235 = vld [vmem:[%s234] sm:$0xf]
    %v236 = vld [vmem:[%s234 + $0x4] sm:$0xf]
    %v237 = vld [vmem:[%s234 + $0x8] sm:$0xf]
    %v238 = vld [vmem:[%s234 + $0xc] sm:$0xf]
    %v239 = vld [vmem:[%s11 + $0x1] sm:$0x1]
    %v240 = vperm.slane %v239, 0
    %v245 = vunpack.c.l.b16 %v235
    %v246 = vunpack.c.l.b16 %v236
    %v247 = vunpack.c.l.b16 %v237
    %v248 = vunpack.c.l.b16 %v238
    %v249 = vpack.c.b16 %v246, %v245
    %v250 = vpack.c.b16 %v248, %v247
    %v254 = vsel %vm216, %v180, 0
    %256 = vmatpush.bf16.msra.mxu0 0
    %257 = vmatpush.bf16.msra.mxu0 0
    %258 = vmatpush.bf16.msra.mxu0 0
    %259 = vmatpush.bf16.msra.mxu0 0
    %260 = vmatpush.bf16.msra.mxu0 0
    %261 = vmatpush.bf16.msra.mxu0 0
    %262 = vmatpush.bf16.msra.mxu0 %v250
    %263 = vmatpush.bf16.msra.mxu0 %v249
    %264 = vmatmul.bf16.gmra.mxu0 %v254
    %v265 = vpop.f32.mrf.mxu0
    %v266 = vadd.f32 %v240, %v265
    %v267 = vpop.f32.mrf.mxu0
    %v268 = vadd.f32 %v240, %v267
    %269 = vdwg.mxu0
    %s270 = scalar_lea.vmem %s10, 32
    %v271 = vld [vmem:[%s270] sm:$0xf]
    %v272 = vld [vmem:[%s270 + $0x4] sm:$0xf]
    %v273 = vld [vmem:[%s270 + $0x8] sm:$0xf]
    %v274 = vld [vmem:[%s270 + $0xc] sm:$0xf]
    %v275 = vld [vmem:[%s11 + $0x2] sm:$0x1]
    %v276 = vperm.slane %v275, 0
    %v281 = vunpack.c.l.b16 %v271
    %v282 = vunpack.c.l.b16 %v272
    %v283 = vunpack.c.l.b16 %v273
    %v284 = vunpack.c.l.b16 %v274
    %v285 = vpack.c.b16 %v282, %v281
    %v286 = vpack.c.b16 %v284, %v283
    %289 = vmatpush.bf16.msra.mxu0 0
    %290 = vmatpush.bf16.msra.mxu0 0
    %291 = vmatpush.bf16.msra.mxu0 0
    %292 = vmatpush.bf16.msra.mxu0 0
    %293 = vmatpush.bf16.msra.mxu0 0
    %294 = vmatpush.bf16.msra.mxu0 0
    %295 = vmatpush.bf16.msra.mxu0 %v286
    %296 = vmatpush.bf16.msra.mxu0 %v285
    %297 = vmatmul.bf16.gmra.mxu0 %v254
    %v298 = vpop.f32.mrf.mxu0
    %v299 = vadd.f32 %v276, %v298
    %v300 = vpop.f32.mrf.mxu0
    %v301 = vadd.f32 %v276, %v300
    %302 = vdwg.mxu0
    %v303 = vmul.f32 %v266, %v187
    %v304 = vmul.f32 %v268, %v188
    %v305 = vmul.f32 %v266, %v189
    %v306 = vmul.f32 %v268, %v190
    %v307 = vmul.f32 %v266, %v191
    %v308 = vmul.f32 %v268, %v192
    %v309 = vmul.f32 %v266, %v193
    %v310 = vmul.f32 %v268, %v194
    %v311 = vpack.c.bf16 %v304, %v303
    %v312 = vpack.c.bf16 %v306, %v305
    %v313 = vpack.c.bf16 %v308, %v307
    %v314 = vpack.c.bf16 %v310, %v309
    %v315 = vmul.f32 %v299, %v187
    %v316 = vmul.f32 %v301, %v188
    %v317 = vmul.f32 %v299, %v189
    %v318 = vmul.f32 %v301, %v190
    %v319 = vmul.f32 %v299, %v191
    %v320 = vmul.f32 %v301, %v192
    %v321 = vmul.f32 %v299, %v193
    %v322 = vmul.f32 %v301, %v194
    %v323 = vpack.c.bf16 %v316, %v315
    %v324 = vpack.c.bf16 %v318, %v317
    %v325 = vpack.c.bf16 %v320, %v319
    %v326 = vpack.c.bf16 %v322, %v321
    %v327 = vpack.c.bf16 %v232, %v230
    %v329 = vsel %vm216, %v327, 0
    %v332 = vsel %vm216, %v311, 0
    %v335 = vsel %vm216, %v312, 0
    %v338 = vsel %vm216, %v313, 0
    %v341 = vsel %vm216, %v314, 0
    %343 = vmatpush.bf16.xpose.msra.mxu0 0
    %344 = vmatpush.bf16.xpose.msra.mxu0 0
    %345 = vmatpush.bf16.xpose.msra.mxu0 0
    %346 = vmatpush.bf16.xpose.msra.mxu0 0
    %347 = vmatpush.bf16.xpose.msra.mxu0 %v341
    %348 = vmatpush.bf16.xpose.msra.mxu0 %v338
    %349 = vmatpush.bf16.xpose.msra.mxu0 %v335
    %350 = vmatpush.bf16.xpose.msra.mxu0 %v332
    %351 = vmatmul.bf16.gmra.mxu0 %v329
    %v352 = vpop.f32.mrf.mxu0
    %v353 = vadd.f32 %v195, %v352
    %v354 = vpop.f32.mrf.mxu0
    %v355 = vadd.f32 %v196, %v354
    %356 = vdwg.mxu0
    %vm357 = vcmask 523264
    %v358 = vsel %vm357, %v353, -inf
    %359 = vmax.xlane.f32.xlu0 %v358
    %v360 = vpop.xlane.xlu0 %359
    %v361 = vsel %vm357, %v355, -inf
    %362 = vmax.xlane.f32.xlu0 %v361
    %v363 = vpop.xlane.xlu0 %362
    %v364 = vsub.f32 %v353, %v360
    %v365 = vsub.f32 %v355, %v363
    %v366 = vmul.f32 %v364, 1.442695
    %v367 = vpow.pop %v366
    %v368 = vmul.f32 %v365, 1.442695
    %v369 = vpow.pop %v368
    %v370 = vpack.c.bf16 %v369, %v367
    %v372 = vsel %vm357, %v370, 0
    %374 = vmatpush.bf16.msra.mxu0 0
    %375 = vmatpush.bf16.msra.mxu0 0
    %376 = vmatpush.bf16.msra.mxu0 0
    %377 = vmatpush.bf16.msra.mxu0 0
    %378 = vmatpush.bf16.msra.mxu0 %v326
    %379 = vmatpush.bf16.msra.mxu0 %v325
    %380 = vmatpush.bf16.msra.mxu0 %v324
    %381 = vmatpush.bf16.msra.mxu0 %v323
    %382 = vmatmul.bf16.gmra.mxu0 %v372
    %v383 = vpop.f32.mrf.mxu0
    %v384 = vadd.f32 0.0, %v383
    %v385 = vpop.f32.mrf.mxu0
    %v386 = vadd.f32 0.0, %v385
    %387 = vdwg.mxu0
    %v388 = vpack.c.bf16 %v188, %v187
    %v389 = vpack.c.bf16 %v190, %v189
    %v390 = vpack.c.bf16 %v192, %v191
    %v391 = vpack.c.bf16 %v194, %v193
    %392 = vmatpush.bf16.msra.mxu0 0
    %393 = vmatpush.bf16.msra.mxu0 0
    %394 = vmatpush.bf16.msra.mxu0 0
    %395 = vmatpush.bf16.msra.mxu0 0
    %396 = vmatpush.bf16.msra.mxu0 %v391
    %397 = vmatpush.bf16.msra.mxu0 %v390
    %398 = vmatpush.bf16.msra.mxu0 %v389
    %399 = vmatpush.bf16.msra.mxu0 %v388
    %400 = vmatmul.bf16.gmra.mxu0 %v372
    %v401 = vpop.f32.mrf.mxu0
    %v402 = vadd.f32 1e-30, %v401
    %v403 = vpop.f32.mrf.mxu0
    %v404 = vadd.f32 1e-30, %v403
    %405 = vdwg.mxu0
    %v406 = vrcp.pop %v402
    %v407 = vrcp.pop %v404
    %v408 = vmul.f32 %v384, %v406
    %v409 = vmul.f32 %v386, %v407
    %v410 = vpack.c.bf16 %v409, %v408
    %s411 = scalar_lea.vmem %s10, 48
    %v412 = vld [vmem:[%s411] sm:$0xf]
    %v413 = vld [vmem:[%s411 + $0x4] sm:$0xf]
    %v414 = vld [vmem:[%s411 + $0x8] sm:$0xf]
    %v415 = vld [vmem:[%s411 + $0xc] sm:$0xf]
    %v416 = vld [vmem:[%s11 + $0x3] sm:$0x1]
    %v417 = vperm.slane %v416, 0
    %v422 = vunpack.c.l.b16 %v412
    %v423 = vunpack.c.l.b16 %v413
    %v424 = vunpack.c.l.b16 %v414
    %v425 = vunpack.c.l.b16 %v415
    %v426 = vpack.c.b16 %v423, %v422
    %v427 = vpack.c.b16 %v425, %v424
    %v431 = vsel %vm216, %v410, 0
    %433 = vmatpush.bf16.msra.mxu0 0
    %434 = vmatpush.bf16.msra.mxu0 0
    %435 = vmatpush.bf16.msra.mxu0 0
    %436 = vmatpush.bf16.msra.mxu0 0
    %437 = vmatpush.bf16.msra.mxu0 0
    %438 = vmatpush.bf16.msra.mxu0 0
    %439 = vmatpush.bf16.msra.mxu0 %v427
    %440 = vmatpush.bf16.msra.mxu0 %v426
    %441 = vmatmul.bf16.gmra.mxu0 %v431
    %v442 = vpop.f32.mrf.mxu0
    %v443 = vadd.f32 %v417, %v442
    %v444 = vpop.f32.mrf.mxu0
    %v445 = vadd.f32 %v417, %v444
    %446 = vdwg.mxu0
    %v447 = vld [vmem:[%s16] sm:$0x1]
    %v448 = vld [vmem:[#allocation10] sm:$0x1]
    %v449 = vadd.f32 %v176, %v443
    %v450 = vadd.f32 %v177, %v445
    %v451 = vsel %vm216, %v449, 0.0
    %452 = vadd.xlane.f32.xlu0 %v451
    %v453 = vpop.xlane.xlu0 %452
    %v454 = vsel %vm216, %v450, 0.0
    %455 = vadd.xlane.f32.xlu0 %v454
    %v456 = vpop.xlane.xlu0 %455
    %v457 = vrcp.pop 32.0
    %v458 = vmul.f32 32.0, %v457
    %v459 = vsub.f32 1.0, %v458
    %v460 = vmul.f32 %v457, %v459
    %v461 = vadd.f32 %v457, %v460
    %vm462 = vweird.f32 %v457
    %v463 = vsel %vm462, %v457, %v461
    %v464 = vmul.f32 %v453, %v463
    %v465 = vmul.f32 %v456, %v463
    %v466 = vsub.f32 %v449, %v464
    %v467 = vsub.f32 %v450, %v465
    %v468 = vmul.f32 %v466, %v466
    %v469 = vmul.f32 %v467, %v467
    %v470 = vsel %vm216, %v468, 0.0
    %471 = vadd.xlane.f32.xlu0 %v470
    %v472 = vpop.xlane.xlu0 %471
    %v473 = vsel %vm216, %v469, 0.0
    %474 = vadd.xlane.f32.xlu0 %v473
    %v475 = vpop.xlane.xlu0 %474
    %v476 = vmul.f32 %v472, %v463
    %v477 = vmul.f32 %v475, %v463
    %v478 = vadd.f32 %v476, 1e-05
    %v479 = vadd.f32 %v477, 1e-05
    %v480 = vrsqrt.pop %v478
    %v481 = vmul.f32 %v480, %v478
    %v482 = vmul.f32 %v481, %v480
    %v483 = vmul.f32 0.5, %v482
    %v484 = vsub.f32 1.5, %v483
    %v485 = vmul.f32 %v480, %v484
    %vm486 = vweird.f32 %v478
    %vm487 = vweird.f32 %v480
    %vm488 = vmor %vm486, %vm487
    %v489 = vsel %vm488, %v480, %v485
    %v490 = vrsqrt.pop %v479
    %v491 = vmul.f32 %v490, %v479
    %v492 = vmul.f32 %v491, %v490
    %v493 = vmul.f32 0.5, %v492
    %v494 = vsub.f32 1.5, %v493
    %v495 = vmul.f32 %v490, %v494
    %vm496 = vweird.f32 %v479
    %vm497 = vweird.f32 %v490
    %vm498 = vmor %vm496, %vm497
    %v499 = vsel %vm498, %v490, %v495
    %v500 = vmul.f32 %v466, %v489
    %v501 = vmul.f32 %v467, %v499
    %v502 = vperm.slane %v447, 0
    %v503 = vmul.f32 %v500, %v502
    %v504 = vmul.f32 %v501, %v502
    %v505 = vperm.slane %v448, 0
    %v506 = vadd.f32 %v503, %v505
    %v507 = vadd.f32 %v504, %v505
    %v508 = vld [vmem:[%s8] sm:$0xff]
    %v509 = vld [vmem:[%s8 + $0x8] sm:$0xff]
    %v510 = vld [vmem:[%s8 + $0x10] sm:$0xff]
    %v511 = vld [vmem:[%s8 + $0x18] sm:$0xff]
    %v512 = vld [vmem:[%s8 + $0x20] sm:$0xff]
    %v513 = vld [vmem:[%s8 + $0x28] sm:$0xff]
    %v514 = vld [vmem:[%s8 + $0x30] sm:$0xff]
    %v515 = vld [vmem:[%s8 + $0x38] sm:$0xff]
    %v516 = vld [vmem:[%s5] sm:$0xff]
    %v517 = vld [vmem:[%s5 + $0x8] sm:$0xff]
    %v518 = vpack.c.bf16 %v507, %v506
    %v519 = vld [vmem:[%s12] sm:$0xf]
    %v520 = vld [vmem:[%s12 + $0x4] sm:$0xf]
    %v521 = vld [vmem:[%s12 + $0x8] sm:$0xf]
    %v522 = vld [vmem:[%s12 + $0xc] sm:$0xf]
    %v523 = vld [vmem:[%s13] sm:$0x1]
    %v524 = vperm.slane %v523, 0
    %v529 = vunpack.c.l.b16 %v519
    %v530 = vunpack.c.l.b16 %v520
    %v531 = vunpack.c.l.b16 %v521
    %v532 = vunpack.c.l.b16 %v522
    %v533 = vpack.c.b16 %v530, %v529
    %v534 = vpack.c.b16 %v532, %v531
    %v538 = vsel %vm216, %v518, 0
    %540 = vmatpush.bf16.msra.mxu0 0
    %541 = vmatpush.bf16.msra.mxu0 0
    %542 = vmatpush.bf16.msra.mxu0 0
    %543 = vmatpush.bf16.msra.mxu0 0
    %544 = vmatpush.bf16.msra.mxu0 0
    %545 = vmatpush.bf16.msra.mxu0 0
    %546 = vmatpush.bf16.msra.mxu0 %v534
    %547 = vmatpush.bf16.msra.mxu0 %v533
    %548 = vmatmul.bf16.gmra.mxu0 %v538
    %v549 = vpop.f32.mrf.mxu0
    %v550 = vadd.f32 %v524, %v549
    %v551 = vpop.f32.mrf.mxu0
    %v552 = vadd.f32 %v524, %v551
    %553 = vdwg.mxu0
    %s554 = scalar_lea.vmem %s12, 16
    %v555 = vld [vmem:[%s554] sm:$0xf]
    %v556 = vld [vmem:[%s554 + $0x4] sm:$0xf]
    %v557 = vld [vmem:[%s554 + $0x8] sm:$0xf]
    %v558 = vld [vmem:[%s554 + $0xc] sm:$0xf]
    %v559 = vld [vmem:[%s13 + $0x1] sm:$0x1]
    %v560 = vperm.slane %v559, 0
    %v565 = vunpack.c.l.b16 %v555
    %v566 = vunpack.c.l.b16 %v556
    %v567 = vunpack.c.l.b16 %v557
    %v568 = vunpack.c.l.b16 %v558
    %v569 = vpack.c.b16 %v566, %v565
    %v570 = vpack.c.b16 %v568, %v567
    %v574 = vsel %vm216, %v183, 0
    %576 = vmatpush.bf16.msra.mxu0 0
    %577 = vmatpush.bf16.msra.mxu0 0
    %578 = vmatpush.bf16.msra.mxu0 0
    %579 = vmatpush.bf16.msra.mxu0 0
    %580 = vmatpush.bf16.msra.mxu0 0
    %581 = vmatpush.bf16.msra.mxu0 0
    %582 = vmatpush.bf16.msra.mxu0 %v570
    %583 = vmatpush.bf16.msra.mxu0 %v569
    %584 = vmatmul.bf16.gmra.mxu0 %v574
    %v585 = vpop.f32.mrf.mxu0
    %v586 = vadd.f32 %v560, %v585
    %v587 = vpop.f32.mrf.mxu0
    %v588 = vadd.f32 %v560, %v587
    %589 = vdwg.mxu0
    %s590 = scalar_lea.vmem %s12, 32
    %v591 = vld [vmem:[%s590] sm:$0xf]
    %v592 = vld [vmem:[%s590 + $0x4] sm:$0xf]
    %v593 = vld [vmem:[%s590 + $0x8] sm:$0xf]
    %v594 = vld [vmem:[%s590 + $0xc] sm:$0xf]
    %v595 = vld [vmem:[%s13 + $0x2] sm:$0x1]
    %v596 = vperm.slane %v595, 0
    %v601 = vunpack.c.l.b16 %v591
    %v602 = vunpack.c.l.b16 %v592
    %v603 = vunpack.c.l.b16 %v593
    %v604 = vunpack.c.l.b16 %v594
    %v605 = vpack.c.b16 %v602, %v601
    %v606 = vpack.c.b16 %v604, %v603
    %609 = vmatpush.bf16.msra.mxu0 0
    %610 = vmatpush.bf16.msra.mxu0 0
    %611 = vmatpush.bf16.msra.mxu0 0
    %612 = vmatpush.bf16.msra.mxu0 0
    %613 = vmatpush.bf16.msra.mxu0 0
    %614 = vmatpush.bf16.msra.mxu0 0
    %615 = vmatpush.bf16.msra.mxu0 %v606
    %616 = vmatpush.bf16.msra.mxu0 %v605
    %617 = vmatmul.bf16.gmra.mxu0 %v574
    %v618 = vpop.f32.mrf.mxu0
    %v619 = vadd.f32 %v596, %v618
    %v620 = vpop.f32.mrf.mxu0
    %v621 = vadd.f32 %v596, %v620
    %622 = vdwg.mxu0
    %v623 = vmul.f32 %v586, %v508
    %v624 = vmul.f32 %v588, %v509
    %v625 = vmul.f32 %v586, %v510
    %v626 = vmul.f32 %v588, %v511
    %v627 = vmul.f32 %v586, %v512
    %v628 = vmul.f32 %v588, %v513
    %v629 = vmul.f32 %v586, %v514
    %v630 = vmul.f32 %v588, %v515
    %v631 = vpack.c.bf16 %v624, %v623
    %v632 = vpack.c.bf16 %v626, %v625
    %v633 = vpack.c.bf16 %v628, %v627
    %v634 = vpack.c.bf16 %v630, %v629
    %v635 = vmul.f32 %v619, %v508
    %v636 = vmul.f32 %v621, %v509
    %v637 = vmul.f32 %v619, %v510
    %v638 = vmul.f32 %v621, %v511
    %v639 = vmul.f32 %v619, %v512
    %v640 = vmul.f32 %v621, %v513
    %v641 = vmul.f32 %v619, %v514
    %v642 = vmul.f32 %v621, %v515
    %v643 = vpack.c.bf16 %v636, %v635
    %v644 = vpack.c.bf16 %v638, %v637
    %v645 = vpack.c.bf16 %v640, %v639
    %v646 = vpack.c.bf16 %v642, %v641
    %v647 = vpack.c.bf16 %v552, %v550
    %v649 = vsel %vm216, %v647, 0
    %v652 = vsel %vm216, %v631, 0
    %v655 = vsel %vm216, %v632, 0
    %v658 = vsel %vm216, %v633, 0
    %v661 = vsel %vm216, %v634, 0
    %663 = vmatpush.bf16.xpose.msra.mxu0 0
    %664 = vmatpush.bf16.xpose.msra.mxu0 0
    %665 = vmatpush.bf16.xpose.msra.mxu0 0
    %666 = vmatpush.bf16.xpose.msra.mxu0 0
    %667 = vmatpush.bf16.xpose.msra.mxu0 %v661
    %668 = vmatpush.bf16.xpose.msra.mxu0 %v658
    %669 = vmatpush.bf16.xpose.msra.mxu0 %v655
    %670 = vmatpush.bf16.xpose.msra.mxu0 %v652
    %671 = vmatmul.bf16.gmra.mxu0 %v649
    %v672 = vpop.f32.mrf.mxu0
    %v673 = vadd.f32 %v516, %v672
    %v674 = vpop.f32.mrf.mxu0
    %v675 = vadd.f32 %v517, %v674
    %676 = vdwg.mxu0
    %v677 = vsel %vm357, %v673, -inf
    %678 = vmax.xlane.f32.xlu0 %v677
    %v679 = vpop.xlane.xlu0 %678
    %v680 = vsel %vm357, %v675, -inf
    %681 = vmax.xlane.f32.xlu0 %v680
    %v682 = vpop.xlane.xlu0 %681
    %v683 = vsub.f32 %v673, %v679
    %v684 = vsub.f32 %v675, %v682
    %v685 = vmul.f32 %v683, 1.442695
    %v686 = vpow.pop %v685
    %v687 = vmul.f32 %v684, 1.442695
    %v688 = vpow.pop %v687
    %v689 = vpack.c.bf16 %v688, %v686
    %v691 = vsel %vm357, %v689, 0
    %693 = vmatpush.bf16.msra.mxu0 0
    %694 = vmatpush.bf16.msra.mxu0 0
    %695 = vmatpush.bf16.msra.mxu0 0
    %696 = vmatpush.bf16.msra.mxu0 0
    %697 = vmatpush.bf16.msra.mxu0 %v646
    %698 = vmatpush.bf16.msra.mxu0 %v645
    %699 = vmatpush.bf16.msra.mxu0 %v644
    %700 = vmatpush.bf16.msra.mxu0 %v643
    %701 = vmatmul.bf16.gmra.mxu0 %v691
    %v702 = vpop.f32.mrf.mxu0
    %v703 = vadd.f32 0.0, %v702
    %v704 = vpop.f32.mrf.mxu0
    %v705 = vadd.f32 0.0, %v704
    %706 = vdwg.mxu0
    %v707 = vpack.c.bf16 %v509, %v508
    %v708 = vpack.c.bf16 %v511, %v510
    %v709 = vpack.c.bf16 %v513, %v512
    %v710 = vpack.c.bf16 %v515, %v514
    %711 = vmatpush.bf16.msra.mxu0 0
    %712 = vmatpush.bf16.msra.mxu0 0
    %713 = vmatpush.bf16.msra.mxu0 0
    %714 = vmatpush.bf16.msra.mxu0 0
    %715 = vmatpush.bf16.msra.mxu0 %v710
    %716 = vmatpush.bf16.msra.mxu0 %v709
    %717 = vmatpush.bf16.msra.mxu0 %v708
    %718 = vmatpush.bf16.msra.mxu0 %v707
    %719 = vmatmul.bf16.gmra.mxu0 %v691
    %v720 = vpop.f32.mrf.mxu0
    %v721 = vadd.f32 1e-30, %v720
    %v722 = vpop.f32.mrf.mxu0
    %v723 = vadd.f32 1e-30, %v722
    %724 = vdwg.mxu0
    %v725 = vrcp.pop %v721
    %v726 = vrcp.pop %v723
    %v727 = vmul.f32 %v703, %v725
    %v728 = vmul.f32 %v705, %v726
    %v729 = vpack.c.bf16 %v728, %v727
    %s730 = scalar_lea.vmem %s12, 48
    %v731 = vld [vmem:[%s730] sm:$0xf]
    %v732 = vld [vmem:[%s730 + $0x4] sm:$0xf]
    %v733 = vld [vmem:[%s730 + $0x8] sm:$0xf]
    %v734 = vld [vmem:[%s730 + $0xc] sm:$0xf]
    %v735 = vld [vmem:[%s13 + $0x3] sm:$0x1]
    %v736 = vperm.slane %v735, 0
    %v741 = vunpack.c.l.b16 %v731
    %v742 = vunpack.c.l.b16 %v732
    %v743 = vunpack.c.l.b16 %v733
    %v744 = vunpack.c.l.b16 %v734
    %v745 = vpack.c.b16 %v742, %v741
    %v746 = vpack.c.b16 %v744, %v743
    %v750 = vsel %vm216, %v729, 0
    %752 = vmatpush.bf16.msra.mxu0 0
    %753 = vmatpush.bf16.msra.mxu0 0
    %754 = vmatpush.bf16.msra.mxu0 0
    %755 = vmatpush.bf16.msra.mxu0 0
    %756 = vmatpush.bf16.msra.mxu0 0
    %757 = vmatpush.bf16.msra.mxu0 0
    %758 = vmatpush.bf16.msra.mxu0 %v746
    %759 = vmatpush.bf16.msra.mxu0 %v745
    %760 = vmatmul.bf16.gmra.mxu0 %v750
    %v761 = vpop.f32.mrf.mxu0
    %v762 = vadd.f32 %v736, %v761
    %v763 = vpop.f32.mrf.mxu0
    %v764 = vadd.f32 %v736, %v763
    %765 = vdwg.mxu0
    %v766 = vld [vmem:[%s16 + $0x1] sm:$0x1]
    %v767 = vld [vmem:[#allocation10 + $0x1] sm:$0x1]
    %v768 = vadd.f32 %v506, %v762
    %v769 = vadd.f32 %v507, %v764
    %v770 = vsel %vm216, %v768, 0.0
    %771 = vadd.xlane.f32.xlu0 %v770
    %v772 = vpop.xlane.xlu0 %771
    %v773 = vsel %vm216, %v769, 0.0
    %774 = vadd.xlane.f32.xlu0 %v773
    %v775 = vpop.xlane.xlu0 %774
    %v776 = vmul.f32 %v772, %v463
    %v777 = vmul.f32 %v775, %v463
    %v778 = vsub.f32 %v768, %v776
    %v779 = vsub.f32 %v769, %v777
    %v780 = vmul.f32 %v778, %v778
    %v781 = vmul.f32 %v779, %v779
    %v782 = vsel %vm216, %v780, 0.0
    %783 = vadd.xlane.f32.xlu0 %v782
    %v784 = vpop.xlane.xlu0 %783
    %v785 = vsel %vm216, %v781, 0.0
    %786 = vadd.xlane.f32.xlu0 %v785
    %v787 = vpop.xlane.xlu0 %786
    %v788 = vmul.f32 %v784, %v463
    %v789 = vmul.f32 %v787, %v463
    %v790 = vadd.f32 %v788, 1e-05
    %v791 = vadd.f32 %v789, 1e-05
    %v792 = vrsqrt.pop %v790
    %v793 = vmul.f32 %v792, %v790
    %v794 = vmul.f32 %v793, %v792
    %v795 = vmul.f32 0.5, %v794
    %v796 = vsub.f32 1.5, %v795
    %v797 = vmul.f32 %v792, %v796
    %vm798 = vweird.f32 %v790
    %vm799 = vweird.f32 %v792
    %vm800 = vmor %vm798, %vm799
    %v801 = vsel %vm800, %v792, %v797
    %v802 = vrsqrt.pop %v791
    %v803 = vmul.f32 %v802, %v791
    %v804 = vmul.f32 %v803, %v802
    %v805 = vmul.f32 0.5, %v804
    %v806 = vsub.f32 1.5, %v805
    %v807 = vmul.f32 %v802, %v806
    %vm808 = vweird.f32 %v791
    %vm809 = vweird.f32 %v802
    %vm810 = vmor %vm808, %vm809
    %v811 = vsel %vm810, %v802, %v807
    %v812 = vmul.f32 %v778, %v801
    %v813 = vmul.f32 %v779, %v811
    %v814 = vperm.slane %v766, 0
    %v815 = vmul.f32 %v812, %v814
    %v816 = vmul.f32 %v813, %v814
    %v817 = vperm.slane %v767, 0
    %v818 = vadd.f32 %v815, %v817
    %v819 = vadd.f32 %v816, %v817
    %v820 = vld [vmem:[%s9] sm:$0xff]
    %v821 = vld [vmem:[%s9 + $0x8] sm:$0xff]
    %v822 = vld [vmem:[%s9 + $0x10] sm:$0xff]
    %v823 = vld [vmem:[%s9 + $0x18] sm:$0xff]
    %v824 = vld [vmem:[%s9 + $0x20] sm:$0xff]
    %v825 = vld [vmem:[%s9 + $0x28] sm:$0xff]
    %v826 = vld [vmem:[%s9 + $0x30] sm:$0xff]
    %v827 = vld [vmem:[%s9 + $0x38] sm:$0xff]
    %v828 = vld [vmem:[%s6] sm:$0xff]
    %v829 = vld [vmem:[%s6 + $0x8] sm:$0xff]
    %v830 = vpack.c.bf16 %v819, %v818
    %v831 = vld [vmem:[%s14] sm:$0xf]
    %v832 = vld [vmem:[%s14 + $0x4] sm:$0xf]
    %v833 = vld [vmem:[%s14 + $0x8] sm:$0xf]
    %v834 = vld [vmem:[%s14 + $0xc] sm:$0xf]
    %v835 = vld [vmem:[%s15] sm:$0x1]
    %v836 = vperm.slane %v835, 0
    %v841 = vunpack.c.l.b16 %v831
    %v842 = vunpack.c.l.b16 %v832
    %v843 = vunpack.c.l.b16 %v833
    %v844 = vunpack.c.l.b16 %v834
    %v845 = vpack.c.b16 %v842, %v841
    %v846 = vpack.c.b16 %v844, %v843
    %v850 = vsel %vm216, %v830, 0
    %852 = vmatpush.bf16.msra.mxu0 0
    %853 = vmatpush.bf16.msra.mxu0 0
    %854 = vmatpush.bf16.msra.mxu0 0
    %855 = vmatpush.bf16.msra.mxu0 0
    %856 = vmatpush.bf16.msra.mxu0 0
    %857 = vmatpush.bf16.msra.mxu0 0
    %858 = vmatpush.bf16.msra.mxu0 %v846
    %859 = vmatpush.bf16.msra.mxu0 %v845
    %860 = vmatmul.bf16.gmra.mxu0 %v850
    %v861 = vpop.f32.mrf.mxu0
    %v862 = vadd.f32 %v836, %v861
    %v863 = vpop.f32.mrf.mxu0
    %v864 = vadd.f32 %v836, %v863
    %865 = vdwg.mxu0
    %s866 = scalar_lea.vmem %s14, 16
    %v867 = vld [vmem:[%s866] sm:$0xf]
    %v868 = vld [vmem:[%s866 + $0x4] sm:$0xf]
    %v869 = vld [vmem:[%s866 + $0x8] sm:$0xf]
    %v870 = vld [vmem:[%s866 + $0xc] sm:$0xf]
    %v871 = vld [vmem:[%s15 + $0x1] sm:$0x1]
    %v872 = vperm.slane %v871, 0
    %v877 = vunpack.c.l.b16 %v867
    %v878 = vunpack.c.l.b16 %v868
    %v879 = vunpack.c.l.b16 %v869
    %v880 = vunpack.c.l.b16 %v870
    %v881 = vpack.c.b16 %v878, %v877
    %v882 = vpack.c.b16 %v880, %v879
    %v886 = vsel %vm216, %v186, 0
    %888 = vmatpush.bf16.msra.mxu0 0
    %889 = vmatpush.bf16.msra.mxu0 0
    %890 = vmatpush.bf16.msra.mxu0 0
    %891 = vmatpush.bf16.msra.mxu0 0
    %892 = vmatpush.bf16.msra.mxu0 0
    %893 = vmatpush.bf16.msra.mxu0 0
    %894 = vmatpush.bf16.msra.mxu0 %v882
    %895 = vmatpush.bf16.msra.mxu0 %v881
    %896 = vmatmul.bf16.gmra.mxu0 %v886
    %v897 = vpop.f32.mrf.mxu0
    %v898 = vadd.f32 %v872, %v897
    %v899 = vpop.f32.mrf.mxu0
    %v900 = vadd.f32 %v872, %v899
    %901 = vdwg.mxu0
    %s902 = scalar_lea.vmem %s14, 32
    %v903 = vld [vmem:[%s902] sm:$0xf]
    %v904 = vld [vmem:[%s902 + $0x4] sm:$0xf]
    %v905 = vld [vmem:[%s902 + $0x8] sm:$0xf]
    %v906 = vld [vmem:[%s902 + $0xc] sm:$0xf]
    %v907 = vld [vmem:[%s15 + $0x2] sm:$0x1]
    %v908 = vperm.slane %v907, 0
    %v913 = vunpack.c.l.b16 %v903
    %v914 = vunpack.c.l.b16 %v904
    %v915 = vunpack.c.l.b16 %v905
    %v916 = vunpack.c.l.b16 %v906
    %v917 = vpack.c.b16 %v914, %v913
    %v918 = vpack.c.b16 %v916, %v915
    %921 = vmatpush.bf16.msra.mxu0 0
    %922 = vmatpush.bf16.msra.mxu0 0
    %923 = vmatpush.bf16.msra.mxu0 0
    %924 = vmatpush.bf16.msra.mxu0 0
    %925 = vmatpush.bf16.msra.mxu0 0
    %926 = vmatpush.bf16.msra.mxu0 0
    %927 = vmatpush.bf16.msra.mxu0 %v918
    %928 = vmatpush.bf16.msra.mxu0 %v917
    %929 = vmatmul.bf16.gmra.mxu0 %v886
    %v930 = vpop.f32.mrf.mxu0
    %v931 = vadd.f32 %v908, %v930
    %v932 = vpop.f32.mrf.mxu0
    %v933 = vadd.f32 %v908, %v932
    %934 = vdwg.mxu0
    %v935 = vmul.f32 %v898, %v820
    %v936 = vmul.f32 %v900, %v821
    %v937 = vmul.f32 %v898, %v822
    %v938 = vmul.f32 %v900, %v823
    %v939 = vmul.f32 %v898, %v824
    %v940 = vmul.f32 %v900, %v825
    %v941 = vmul.f32 %v898, %v826
    %v942 = vmul.f32 %v900, %v827
    %v943 = vpack.c.bf16 %v936, %v935
    %v944 = vpack.c.bf16 %v938, %v937
    %v945 = vpack.c.bf16 %v940, %v939
    %v946 = vpack.c.bf16 %v942, %v941
    %v947 = vmul.f32 %v931, %v820
    %v948 = vmul.f32 %v933, %v821
    %v949 = vmul.f32 %v931, %v822
    %v950 = vmul.f32 %v933, %v823
    %v951 = vmul.f32 %v931, %v824
    %v952 = vmul.f32 %v933, %v825
    %v953 = vmul.f32 %v931, %v826
    %v954 = vmul.f32 %v933, %v827
    %v955 = vpack.c.bf16 %v948, %v947
    %v956 = vpack.c.bf16 %v950, %v949
    %v957 = vpack.c.bf16 %v952, %v951
    %v958 = vpack.c.bf16 %v954, %v953
    %v959 = vpack.c.bf16 %v864, %v862
    %v961 = vsel %vm216, %v959, 0
    %v964 = vsel %vm216, %v943, 0
    %v967 = vsel %vm216, %v944, 0
    %v970 = vsel %vm216, %v945, 0
    %v973 = vsel %vm216, %v946, 0
    %975 = vmatpush.bf16.xpose.msra.mxu0 0
    %976 = vmatpush.bf16.xpose.msra.mxu0 0
    %977 = vmatpush.bf16.xpose.msra.mxu0 0
    %978 = vmatpush.bf16.xpose.msra.mxu0 0
    %979 = vmatpush.bf16.xpose.msra.mxu0 %v973
    %980 = vmatpush.bf16.xpose.msra.mxu0 %v970
    %981 = vmatpush.bf16.xpose.msra.mxu0 %v967
    %982 = vmatpush.bf16.xpose.msra.mxu0 %v964
    %983 = vmatmul.bf16.gmra.mxu0 %v961
    %v984 = vpop.f32.mrf.mxu0
    %v985 = vadd.f32 %v828, %v984
    %v986 = vpop.f32.mrf.mxu0
    %v987 = vadd.f32 %v829, %v986
    %988 = vdwg.mxu0
    %v989 = vsel %vm357, %v985, -inf
    %990 = vmax.xlane.f32.xlu0 %v989
    %v991 = vpop.xlane.xlu0 %990
    %v992 = vsel %vm357, %v987, -inf
    %993 = vmax.xlane.f32.xlu0 %v992
    %v994 = vpop.xlane.xlu0 %993
    %v995 = vsub.f32 %v985, %v991
    %v996 = vsub.f32 %v987, %v994
    %v997 = vmul.f32 %v995, 1.442695
    %v998 = vpow.pop %v997
    %v999 = vmul.f32 %v996, 1.442695
    %v1000 = vpow.pop %v999
    %v1001 = vpack.c.bf16 %v1000, %v998
    %v1003 = vsel %vm357, %v1001, 0
    %1005 = vmatpush.bf16.msra.mxu0 0
    %1006 = vmatpush.bf16.msra.mxu0 0
    %1007 = vmatpush.bf16.msra.mxu0 0
    %1008 = vmatpush.bf16.msra.mxu0 0
    %1009 = vmatpush.bf16.msra.mxu0 %v958
    %1010 = vmatpush.bf16.msra.mxu0 %v957
    %1011 = vmatpush.bf16.msra.mxu0 %v956
    %1012 = vmatpush.bf16.msra.mxu0 %v955
    %1013 = vmatmul.bf16.gmra.mxu0 %v1003
    %v1014 = vpop.f32.mrf.mxu0
    %v1015 = vadd.f32 0.0, %v1014
    %v1016 = vpop.f32.mrf.mxu0
    %v1017 = vadd.f32 0.0, %v1016
    %1018 = vdwg.mxu0
    %v1019 = vpack.c.bf16 %v821, %v820
    %v1020 = vpack.c.bf16 %v823, %v822
    %v1021 = vpack.c.bf16 %v825, %v824
    %v1022 = vpack.c.bf16 %v827, %v826
    %1023 = vmatpush.bf16.msra.mxu0 0
    %1024 = vmatpush.bf16.msra.mxu0 0
    %1025 = vmatpush.bf16.msra.mxu0 0
    %1026 = vmatpush.bf16.msra.mxu0 0
    %1027 = vmatpush.bf16.msra.mxu0 %v1022
    %1028 = vmatpush.bf16.msra.mxu0 %v1021
    %1029 = vmatpush.bf16.msra.mxu0 %v1020
    %1030 = vmatpush.bf16.msra.mxu0 %v1019
    %1031 = vmatmul.bf16.gmra.mxu0 %v1003
    %v1032 = vpop.f32.mrf.mxu0
    %v1033 = vadd.f32 1e-30, %v1032
    %v1034 = vpop.f32.mrf.mxu0
    %v1035 = vadd.f32 1e-30, %v1034
    %1036 = vdwg.mxu0
    %v1037 = vrcp.pop %v1033
    %v1038 = vrcp.pop %v1035
    %v1039 = vmul.f32 %v1015, %v1037
    %v1040 = vmul.f32 %v1017, %v1038
    %v1041 = vpack.c.bf16 %v1040, %v1039
    %s1042 = scalar_lea.vmem %s14, 48
    %v1043 = vld [vmem:[%s1042] sm:$0xf]
    %v1044 = vld [vmem:[%s1042 + $0x4] sm:$0xf]
    %v1045 = vld [vmem:[%s1042 + $0x8] sm:$0xf]
    %v1046 = vld [vmem:[%s1042 + $0xc] sm:$0xf]
    %v1047 = vld [vmem:[%s15 + $0x3] sm:$0x1]
    %v1048 = vperm.slane %v1047, 0
    %v1053 = vunpack.c.l.b16 %v1043
    %v1054 = vunpack.c.l.b16 %v1044
    %v1055 = vunpack.c.l.b16 %v1045
    %v1056 = vunpack.c.l.b16 %v1046
    %v1057 = vpack.c.b16 %v1054, %v1053
    %v1058 = vpack.c.b16 %v1056, %v1055
    %v1062 = vsel %vm216, %v1041, 0
    %1064 = vmatpush.bf16.msra.mxu0 0
    %1065 = vmatpush.bf16.msra.mxu0 0
    %1066 = vmatpush.bf16.msra.mxu0 0
    %1067 = vmatpush.bf16.msra.mxu0 0
    %1068 = vmatpush.bf16.msra.mxu0 0
    %1069 = vmatpush.bf16.msra.mxu0 0
    %1070 = vmatpush.bf16.msra.mxu0 %v1058
    %1071 = vmatpush.bf16.msra.mxu0 %v1057
    %1072 = vmatmul.bf16.gmra.mxu0 %v1062
    %v1073 = vpop.f32.mrf.mxu0
    %v1074 = vadd.f32 %v1048, %v1073
    %v1075 = vpop.f32.mrf.mxu0
    %v1076 = vadd.f32 %v1048, %v1075
    %1077 = vdwg.mxu0
    %v1078 = vld [vmem:[%s16 + $0x2] sm:$0x1]
    %v1079 = vld [vmem:[#allocation10 + $0x2] sm:$0x1]
    %v1080 = vadd.f32 %v818, %v1074
    %v1081 = vadd.f32 %v819, %v1076
    %v1082 = vsel %vm216, %v1080, 0.0
    %1083 = vadd.xlane.f32.xlu0 %v1082
    %v1084 = vpop.xlane.xlu0 %1083
    %v1085 = vsel %vm216, %v1081, 0.0
    %1086 = vadd.xlane.f32.xlu0 %v1085
    %v1087 = vpop.xlane.xlu0 %1086
    %v1088 = vmul.f32 %v1084, %v463
    %v1089 = vmul.f32 %v1087, %v463
    %v1090 = vsub.f32 %v1080, %v1088
    %v1091 = vsub.f32 %v1081, %v1089
    %v1092 = vmul.f32 %v1090, %v1090
    %v1093 = vmul.f32 %v1091, %v1091
    %v1094 = vsel %vm216, %v1092, 0.0
    %1095 = vadd.xlane.f32.xlu0 %v1094
    %v1096 = vpop.xlane.xlu0 %1095
    %v1097 = vsel %vm216, %v1093, 0.0
    %1098 = vadd.xlane.f32.xlu0 %v1097
    %v1099 = vpop.xlane.xlu0 %1098
    %v1100 = vmul.f32 %v1096, %v463
    %v1101 = vmul.f32 %v1099, %v463
    %v1102 = vadd.f32 %v1100, 1e-05
    %v1103 = vadd.f32 %v1101, 1e-05
    %v1104 = vrsqrt.pop %v1102
    %v1105 = vmul.f32 %v1104, %v1102
    %v1106 = vmul.f32 %v1105, %v1104
    %v1107 = vmul.f32 0.5, %v1106
    %v1108 = vsub.f32 1.5, %v1107
    %v1109 = vmul.f32 %v1104, %v1108
    %vm1110 = vweird.f32 %v1102
    %vm1111 = vweird.f32 %v1104
    %vm1112 = vmor %vm1110, %vm1111
    %v1113 = vsel %vm1112, %v1104, %v1109
    %v1114 = vrsqrt.pop %v1103
    %v1115 = vmul.f32 %v1114, %v1103
    %v1116 = vmul.f32 %v1115, %v1114
    %v1117 = vmul.f32 0.5, %v1116
    %v1118 = vsub.f32 1.5, %v1117
    %v1119 = vmul.f32 %v1114, %v1118
    %vm1120 = vweird.f32 %v1103
    %vm1121 = vweird.f32 %v1114
    %vm1122 = vmor %vm1120, %vm1121
    %v1123 = vsel %vm1122, %v1114, %v1119
    %v1124 = vmul.f32 %v1090, %v1113
    %v1125 = vmul.f32 %v1091, %v1123
    %v1126 = vperm.slane %v1078, 0
    %v1127 = vmul.f32 %v1124, %v1126
    %v1128 = vmul.f32 %v1125, %v1126
    %v1129 = vperm.slane %v1079, 0
    %v1130 = vadd.f32 %v1127, %v1129
    %v1131 = vadd.f32 %v1128, %v1129
    %v1132 = vpack.c.bf16 %v1131, %v1130
    %v1133 = vld [vmem:[%s18] sm:$0xff]
    %v1134 = vld [vmem:[%s18 + $0x8] sm:$0xff]
    %v1135 = vld [vmem:[%s18 + $0x10] sm:$0xff]
    %v1136 = vld [vmem:[%s18 + $0x18] sm:$0xff]
    %v1137 = vld [vmem:[#allocation11] sm:$0x3]
    %v1139 = vperm.slane %v1137, 0
    %v1140 = vperm.slane %v1137, 1
    %v1147 = vunpack.c.l.b16 %v1133
    %v1148 = vunpack.c.h.b16 %v1133
    %v1149 = vunpack.c.l.b16 %v1134
    %v1150 = vunpack.c.h.b16 %v1134
    %v1151 = vunpack.c.l.b16 %v1135
    %v1152 = vunpack.c.h.b16 %v1135
    %v1153 = vunpack.c.l.b16 %v1136
    %v1154 = vunpack.c.h.b16 %v1136
    %v1155 = vpack.c.b16 %v1149, %v1147
    %v1156 = vpack.c.b16 %v1150, %v1148
    %v1157 = vpack.c.b16 %v1153, %v1151
    %v1158 = vpack.c.b16 %v1154, %v1152
    %v1164 = vsel %vm216, %v1132, 0
    %1166 = vmatpush.bf16.msra.mxu0 0
    %1167 = vmatpush.bf16.msra.mxu0 0
    %1168 = vmatpush.bf16.msra.mxu0 0
    %1169 = vmatpush.bf16.msra.mxu0 0
    %1170 = vmatpush.bf16.msra.mxu0 0
    %1171 = vmatpush.bf16.msra.mxu0 0
    %1172 = vmatpush.bf16.msra.mxu0 %v1157
    %1173 = vmatpush.bf16.msra.mxu0 %v1155
    %1174 = vmatmul.bf16.gmra.mxu0 %v1164
    %v1175 = vpop.f32.mrf.mxu0
    %v1176 = vadd.f32 %v1139, %v1175
    %v1177 = vpop.f32.mrf.mxu0
    %v1178 = vadd.f32 %v1139, %v1177
    %1179 = vdwg.mxu0
    %1180 = vmatpush.bf16.msra.mxu0 0
    %1181 = vmatpush.bf16.msra.mxu0 0
    %1182 = vmatpush.bf16.msra.mxu0 0
    %1183 = vmatpush.bf16.msra.mxu0 0
    %1184 = vmatpush.bf16.msra.mxu0 0
    %1185 = vmatpush.bf16.msra.mxu0 0
    %1186 = vmatpush.bf16.msra.mxu0 %v1158
    %1187 = vmatpush.bf16.msra.mxu0 %v1156
    %1188 = vmatmul.bf16.gmra.mxu0 %v1164
    %v1189 = vpop.f32.mrf.mxu0
    %v1190 = vadd.f32 %v1140, %v1189
    %v1191 = vpop.f32.mrf.mxu0
    %v1192 = vadd.f32 %v1140, %v1191
    %1193 = vdwg.mxu0
    %v1194 = vmax.f32 %v1176, 0.0
    %v1195 = vmax.f32 %v1190, 0.0
    %v1196 = vmax.f32 %v1178, 0.0
    %v1197 = vmax.f32 %v1192, 0.0
    %v1198 = vpack.c.bf16 %v1196, %v1194
    %v1199 = vpack.c.bf16 %v1197, %v1195
    %v1200 = vld [vmem:[%s20] sm:$0xf]
    %v1201 = vld [vmem:[%s20 + $0x4] sm:$0xf]
    %v1202 = vld [vmem:[%s20 + $0x8] sm:$0xf]
    %v1203 = vld [vmem:[%s20 + $0xc] sm:$0xf]
    %v1204 = vld [vmem:[%s20 + $0x10] sm:$0xf]
    %v1205 = vld [vmem:[%s20 + $0x14] sm:$0xf]
    %v1206 = vld [vmem:[%s20 + $0x18] sm:$0xf]
    %v1207 = vld [vmem:[%s20 + $0x1c] sm:$0xf]
    %v1208 = vld [vmem:[%s20 + $0x20] sm:$0xf]
    %v1209 = vld [vmem:[%s20 + $0x24] sm:$0xf]
    %v1210 = vld [vmem:[%s20 + $0x28] sm:$0xf]
    %v1211 = vld [vmem:[%s20 + $0x2c] sm:$0xf]
    %v1212 = vld [vmem:[%s20 + $0x30] sm:$0xf]
    %v1213 = vld [vmem:[%s20 + $0x34] sm:$0xf]
    %v1214 = vld [vmem:[%s20 + $0x38] sm:$0xf]
    %v1215 = vld [vmem:[%s20 + $0x3c] sm:$0xf]
    %v1216 = vld [vmem:[%s20 + $0x40] sm:$0xf]
    %v1217 = vld [vmem:[%s20 + $0x44] sm:$0xf]
    %v1218 = vld [vmem:[%s20 + $0x48] sm:$0xf]
    %v1219 = vld [vmem:[%s20 + $0x4c] sm:$0xf]
    %v1220 = vld [vmem:[%s20 + $0x50] sm:$0xf]
    %v1221 = vld [vmem:[%s20 + $0x54] sm:$0xf]
    %v1222 = vld [vmem:[%s20 + $0x58] sm:$0xf]
    %v1223 = vld [vmem:[%s20 + $0x5c] sm:$0xf]
    %v1224 = vld [vmem:[%s20 + $0x60] sm:$0xf]
    %v1225 = vld [vmem:[%s20 + $0x64] sm:$0xf]
    %v1226 = vld [vmem:[%s20 + $0x68] sm:$0xf]
    %v1227 = vld [vmem:[%s20 + $0x6c] sm:$0xf]
    %v1228 = vld [vmem:[%s20 + $0x70] sm:$0xf]
    %v1229 = vld [vmem:[%s20 + $0x74] sm:$0xf]
    %v1230 = vld [vmem:[%s20 + $0x78] sm:$0xf]
    %v1231 = vld [vmem:[%s20 + $0x7c] sm:$0xf]
    %v1232 = vld [vmem:[#allocation13] sm:$0x1]
    %v1234 = vperm.slane %v1232, 0
    %v1268 = vunpack.c.l.b16 %v1200
    %v1269 = vunpack.c.l.b16 %v1201
    %v1270 = vunpack.c.l.b16 %v1202
    %v1271 = vunpack.c.l.b16 %v1203
    %v1272 = vunpack.c.l.b16 %v1204
    %v1273 = vunpack.c.l.b16 %v1205
    %v1274 = vunpack.c.l.b16 %v1206
    %v1275 = vunpack.c.l.b16 %v1207
    %v1276 = vunpack.c.l.b16 %v1208
    %v1277 = vunpack.c.l.b16 %v1209
    %v1278 = vunpack.c.l.b16 %v1210
    %v1279 = vunpack.c.l.b16 %v1211
    %v1280 = vunpack.c.l.b16 %v1212
    %v1281 = vunpack.c.l.b16 %v1213
    %v1282 = vunpack.c.l.b16 %v1214
    %v1283 = vunpack.c.l.b16 %v1215
    %v1284 = vunpack.c.l.b16 %v1216
    %v1285 = vunpack.c.l.b16 %v1217
    %v1286 = vunpack.c.l.b16 %v1218
    %v1287 = vunpack.c.l.b16 %v1219
    %v1288 = vunpack.c.l.b16 %v1220
    %v1289 = vunpack.c.l.b16 %v1221
    %v1290 = vunpack.c.l.b16 %v1222
    %v1291 = vunpack.c.l.b16 %v1223
    %v1292 = vunpack.c.l.b16 %v1224
    %v1293 = vunpack.c.l.b16 %v1225
    %v1294 = vunpack.c.l.b16 %v1226
    %v1295 = vunpack.c.l.b16 %v1227
    %v1296 = vunpack.c.l.b16 %v1228
    %v1297 = vunpack.c.l.b16 %v1229
    %v1298 = vunpack.c.l.b16 %v1230
    %v1299 = vunpack.c.l.b16 %v1231
    %v1300 = vpack.c.b16 %v1269, %v1268
    %v1301 = vpack.c.b16 %v1271, %v1270
    %v1302 = vpack.c.b16 %v1273, %v1272
    %v1303 = vpack.c.b16 %v1275, %v1274
    %v1304 = vpack.c.b16 %v1277, %v1276
    %v1305 = vpack.c.b16 %v1279, %v1278
    %v1306 = vpack.c.b16 %v1281, %v1280
    %v1307 = vpack.c.b16 %v1283, %v1282
    %v1308 = vpack.c.b16 %v1285, %v1284
    %v1309 = vpack.c.b16 %v1287, %v1286
    %v1310 = vpack.c.b16 %v1289, %v1288
    %v1311 = vpack.c.b16 %v1291, %v1290
    %v1312 = vpack.c.b16 %v1293, %v1292
    %v1313 = vpack.c.b16 %v1295, %v1294
    %v1314 = vpack.c.b16 %v1297, %v1296
    %v1315 = vpack.c.b16 %v1299, %v1298
    %1332 = vmatpush.bf16.msra.mxu0 %v1307
    %1333 = vmatpush.bf16.msra.mxu0 %v1306
    %1334 = vmatpush.bf16.msra.mxu0 %v1305
    %1335 = vmatpush.bf16.msra.mxu0 %v1304
    %1336 = vmatpush.bf16.msra.mxu0 %v1303
    %1337 = vmatpush.bf16.msra.mxu0 %v1302
    %1338 = vmatpush.bf16.msra.mxu0 %v1301
    %1339 = vmatpush.bf16.msra.mxu0 %v1300
    %1340 = vmatmul.bf16.gmra.mxu0 %v1198
    %v1341 = vpop.f32.mrf.mxu0
    %v1342 = vadd.f32 %v1234, %v1341
    %v1343 = vpop.f32.mrf.mxu0
    %v1344 = vadd.f32 %v1234, %v1343
    %1345 = vdwg.mxu0
    %1346 = vmatpush.bf16.msra.mxu0 %v1315
    %1347 = vmatpush.bf16.msra.mxu0 %v1314
    %1348 = vmatpush.bf16.msra.mxu0 %v1313
    %1349 = vmatpush.bf16.msra.mxu0 %v1312
    %1350 = vmatpush.bf16.msra.mxu0 %v1311
    %1351 = vmatpush.bf16.msra.mxu0 %v1310
    %1352 = vmatpush.bf16.msra.mxu0 %v1309
    %1353 = vmatpush.bf16.msra.mxu0 %v1308
    %1354 = vmatmul.bf16.gmra.mxu0 %v1199
    %v1355 = vpop.f32.mrf.mxu0
    %v1356 = vadd.f32 %v1342, %v1355
    %v1357 = vpop.f32.mrf.mxu0
    %v1358 = vadd.f32 %v1344, %v1357
    %1359 = vdwg.mxu0
    %v1360 = vld [vmem:[%s16 + $0x3] sm:$0x1]
    %v1361 = vld [vmem:[#allocation10 + $0x3] sm:$0x1]
    %v1362 = vadd.f32 %v1130, %v1356
    %v1363 = vadd.f32 %v1131, %v1358
    %v1364 = vsel %vm216, %v1362, 0.0
    %1365 = vadd.xlane.f32.xlu0 %v1364
    %v1366 = vpop.xlane.xlu0 %1365
    %v1367 = vsel %vm216, %v1363, 0.0
    %1368 = vadd.xlane.f32.xlu0 %v1367
    %v1369 = vpop.xlane.xlu0 %1368
    %v1370 = vmul.f32 %v1366, %v463
    %v1371 = vmul.f32 %v1369, %v463
    %v1372 = vsub.f32 %v1362, %v1370
    %v1373 = vsub.f32 %v1363, %v1371
    %v1374 = vmul.f32 %v1372, %v1372
    %v1375 = vmul.f32 %v1373, %v1373
    %v1376 = vsel %vm216, %v1374, 0.0
    %1377 = vadd.xlane.f32.xlu0 %v1376
    %v1378 = vpop.xlane.xlu0 %1377
    %v1379 = vsel %vm216, %v1375, 0.0
    %1380 = vadd.xlane.f32.xlu0 %v1379
    %v1381 = vpop.xlane.xlu0 %1380
    %v1382 = vmul.f32 %v1378, %v463
    %v1383 = vmul.f32 %v1381, %v463
    %v1384 = vadd.f32 %v1382, 1e-05
    %v1385 = vadd.f32 %v1383, 1e-05
    %v1386 = vrsqrt.pop %v1384
    %v1387 = vmul.f32 %v1386, %v1384
    %v1388 = vmul.f32 %v1387, %v1386
    %v1389 = vmul.f32 0.5, %v1388
    %v1390 = vsub.f32 1.5, %v1389
    %v1391 = vmul.f32 %v1386, %v1390
    %vm1392 = vweird.f32 %v1384
    %vm1393 = vweird.f32 %v1386
    %vm1394 = vmor %vm1392, %vm1393
    %v1395 = vsel %vm1394, %v1386, %v1391
    %v1396 = vrsqrt.pop %v1385
    %v1397 = vmul.f32 %v1396, %v1385
    %v1398 = vmul.f32 %v1397, %v1396
    %v1399 = vmul.f32 0.5, %v1398
    %v1400 = vsub.f32 1.5, %v1399
    %v1401 = vmul.f32 %v1396, %v1400
    %vm1402 = vweird.f32 %v1385
    %vm1403 = vweird.f32 %v1396
    %vm1404 = vmor %vm1402, %vm1403
    %v1405 = vsel %vm1404, %v1396, %v1401
    %v1406 = vmul.f32 %v1372, %v1395
    %v1407 = vmul.f32 %v1373, %v1405
    %v1408 = vperm.slane %v1360, 0
    %v1409 = vmul.f32 %v1406, %v1408
    %v1410 = vmul.f32 %v1407, %v1408
    %v1411 = vperm.slane %v1361, 0
    %v1412 = vadd.f32 %v1409, %v1411
    %v1413 = vadd.f32 %v1410, %v1411
    %1414 = vst.msk [vmem:[#allocation14] sm:$0xff] %vm216, %v1412
    %1415 = vst.msk [vmem:[#allocation14 + $0x8] sm:$0xff] %vm216, %v1413
    // Predicated region
    $region118: #{decoder_layer_forward.1} parent=1 // pred_check
      _
    $region119: #{decoder_layer_forward.1} parent=1 // pred_check_branch
      %1417 = sbr.rel (0) target = $region121
    $region120: #{decoder_layer_forward.1} parent=1 // pred_region
      %1419 = vsyncadd [#allocation4], 0
      %s1420 = sshll.u32 [#allocation14], 4
      %s1421 = int_to_ptr.vmem [resolvable:$true] %s1420
      %s1422 = sshll.u32 %s22, 4
      %s1423 = int_to_ptr.hbm [resolvable:$true] %s1422
      %1428 = dma.vmem_to_hbm [thread:$0]  %s1421, 256, %s1423, [#allocation4], 128, 128, 8
    $region121: #{decoder_layer_forward.1} parent=1 // pred_fallthru
      _
    // Predicated region
    $region122: #{decoder_layer_forward.1} parent=1 // pred_check
      _
    $region123: #{decoder_layer_forward.1} parent=1 // pred_check_branch
      %1430 = sbr.rel (0) target = $region125
    $region124: #{decoder_layer_forward.1} parent=1 // pred_region
      %1432 = dma.done [#allocation4], 256
    $region125: #{decoder_layer_forward.1} parent=1 // pred_fallthru
      _
    %1433 = vsyncpa [#allocation3], 1
    %1434 = vsyncpa [#allocation6], 1
    %1435 = vsyncpa [#allocation9], 1
    %1436 = vsyncpa [#allocation12], 1
    %1437 = vsyncpa [#allocation4], 1

</llo_original>
